<compile_context>
chip_gen: v7x
topology: tpu7x:2x2x1
jax: 0.10.0
libtpu: 0.0.40
codegen_flags: <defaults>
</compile_context>

<pallas_src>
import jax
import jax.numpy as jnp
from jax.experimental import pallas as pl
from jax.experimental.pallas import tpu as pltpu


# ----------------------------------------------------------------------------
# Hyper-parameters (the "params" object of the PyTorch module), small shapes.
# ----------------------------------------------------------------------------
N_NODES = 16          # number of graph nodes
E_HALF = 8            # undirected edge pairs
N_EDGES = 2 * E_HALF  # directed edges (reverse edges appended)
INP_DIM = 8
EMB_DIM = 16
NUM_GCN_LAYERS = 2
AUG_NUM_RELS = 3
NUM_BASES = 2
EDGE_REP = 2
EDGE_PICK_RATIO = 0.5
OUT_EMB_DIM = EMB_DIM * NUM_GCN_LAYERS  # 32
LANE = 128            # lane-dense output width


# ----------------------------------------------------------------------------
# The single fused kernel (no grid; everything lives in VMEM).
#   layer:  msg = h @ [W_rel_0..W_rel_{R-1} | W_self]        (one packed dot)
#           src_msg = Gsrc_bd @ msg ; sel = src_msg * relmask
#           edge_msg = sel @ summat ; agg = GdstT_masked @ edge_msg
#           h = relu(agg + bias)
#   head:   head = G_all @ concat(layer outputs)             (one packed gather)
#           edge_out = relu(sum_b head_b @ W1_b + b1) @ W2_pad + b2_pad   [E,128]
#           node_out = head_node @ pad_eye                               [N,128]
# ----------------------------------------------------------------------------
def make_fused_kernel(num_layers):
    def kernel(feat_ref, gsrc_ref, relmask_ref, summat_ref, gdsttm_ref, *rest):
        layer_refs = rest[:2 * num_layers]                      # (wcat, bias) per layer
        (gall_ref, w1_ref, b1_ref, w2_ref, b2_ref, padeye_ref,
         node_out_ref, edge_out_ref) = rest[2 * num_layers:]

        f32, bf16 = jnp.float32, jnp.bfloat16
        dot = lambda a, b: jnp.dot(a, b, preferred_element_type=f32)

        gsrc = gsrc_ref[...]          # [REP*EA, REP*N]      bf16, block-diag over reps
        relmask = relmask_ref[...]    # [REP*EA, (R+1)*EMB]  f32 relation-block selector
        summat = summat_ref[...]      # [(R+1)*EMB, EMB]     bf16 stacked identities
        gdsttm = gdsttm_ref[...]      # [REP*N, REP*EA]      bf16, edge mask folded in

        h_b = feat_ref[...]           # [REP*N, Din] bf16
        hs = []
        for l in range(num_layers):   # static unroll (2 layers)
            wcat = layer_refs[2 * l][...]        # [Din, (R+1)*EMB] bf16  (rel | self)
            bias = layer_refs[2 * l + 1][...]    # [1, EMB] f32
            msg = dot(h_b, wcat)                              # [REP*N, (R+1)*EMB]
            src_msg = dot(gsrc, msg.astype(bf16))             # [REP*EA, (R+1)*EMB]
            sel = src_msg * relmask                           # keep own relation block (f32 VPU)
            edge_msg = dot(sel.astype(bf16), summat)          # [REP*EA, EMB]
            agg = dot(gdsttm, edge_msg.astype(bf16))          # [REP*N, EMB] masked scatter-add
            h_f = jnp.maximum(agg + bias, 0.0)                # F.relu, f32
            hs.append(h_f)
            h_b = h_f.astype(bf16)

        repr_all = hs[0] if num_layers == 1 else jnp.concatenate(hs, axis=1)  # [REP*N, OUT]
        repr_b = repr_all.astype(bf16)

        # one matmul = pos/neg src/dst masked means (rows 0:4E) + node mean (rows 4E:4E+N)
        head = dot(gall_ref[...], repr_b)                     # [4E+N, OUT] f32
        n_edges = edge_out_ref.shape[0]
        out_dim = repr_all.shape[1]

        # node2edge_fc: Linear(4*OUT -> 2*OUT) + ReLU + Linear(2*OUT -> OUT, lane-padded to 128)
        hfc = b1_ref[...]
        for b in range(4):            # W1 consumed as 4 sublane-aligned row blocks
            hfc = hfc + dot(head[b * n_edges:(b + 1) * n_edges].astype(bf16),
                            w1_ref[b * out_dim:(b + 1) * out_dim, :])
        hfc = jnp.maximum(hfc, 0.0)
        edge_out_ref[...] = dot(hfc.astype(bf16), w2_ref[...]) + b2_ref[...]   # [E, 128]
        node_out_ref[...] = dot(head[4 * n_edges:].astype(bf16), padeye_ref[...])  # [N, 128]

    return kernel


# ----------------------------------------------------------------------------
# Parameter init (deterministic, shapes from the module __init__).
# ----------------------------------------------------------------------------
def init_params(key):
    keys = jax.random.split(key, 16)
    scale = 0.1
    layers = []
    dims = [(INP_DIM, EMB_DIM)] + [(EMB_DIM, EMB_DIM)] * (NUM_GCN_LAYERS - 1)
    kidx = 0
    for (din, dout) in dims:
        layers.append(dict(
            basis=scale * jax.random.normal(keys[kidx], (NUM_BASES, din, dout), jnp.float32),
            w_comp=scale * jax.random.normal(keys[kidx + 1], (AUG_NUM_RELS, NUM_BASES), jnp.float32),
            w_self=scale * jax.random.normal(keys[kidx + 2], (din, dout), jnp.float32),
            bias=jnp.zeros((1, dout), jnp.float32),
        ))
        kidx += 3
    fc = dict(
        w1=scale * jax.random.normal(keys[kidx], (OUT_EMB_DIM * 4, OUT_EMB_DIM * 2), jnp.float32),
        b1=jnp.zeros((1, OUT_EMB_DIM * 2), jnp.float32),
        w2=scale * jax.random.normal(keys[kidx + 1], (OUT_EMB_DIM * 2, OUT_EMB_DIM), jnp.float32),
        b2=jnp.zeros((1, OUT_EMB_DIM), jnp.float32),
    )
    return dict(layers=layers, fc=fc)


# ----------------------------------------------------------------------------
# MultiRGCN.forward(): wrapper precompute + one fused, grid-less pallas_call.
# ----------------------------------------------------------------------------
@jax.jit
def multi_rgcn_forward(feat, src, dst, rel, base_mask, params, key):
    N, E, R = N_NODES, N_EDGES, AUG_NUM_RELS
    f32, bf16 = jnp.float32, jnp.bfloat16

    # random edge-subset masks (torch.bernoulli equivalent), one per edge_rep
    masks = []
    for i in range(EDGE_REP):
        k = jax.random.fold_in(key, i)
        bern = jax.random.bernoulli(k, p=EDGE_PICK_RATIO,
                                    shape=(E_HALF, 1)).astype(f32)
        masks.append(jnp.concatenate([bern, bern], axis=0) * base_mask)   # [E, 1]

    # ---- message passing structure, batched over edge_reps (block diagonal) ----
    # self loop folded in as relation R via N always-on self edges per rep
    node_ids = jnp.arange(N, dtype=src.dtype)
    src_a = jnp.concatenate([src, node_ids])                              # [EA]
    dst_a = jnp.concatenate([dst, node_ids])
    rel_a = jnp.concatenate([rel, jnp.full((N,), R, dtype=rel.dtype)])
    gsrc_a = jax.nn.one_hot(src_a, N, dtype=f32)                          # [EA, N]
    gdst_a = jax.nn.one_hot(dst_a, N, dtype=f32)                          # [EA, N]
    relmask_a = jnp.repeat(jax.nn.one_hot(rel_a, R + 1, dtype=f32),
                           EMB_DIM, axis=1)                               # [EA, (R+1)*EMB]
    summat = jnp.tile(jnp.eye(EMB_DIM, dtype=f32), (R + 1, 1))            # [(R+1)*EMB, EMB]

    gsrc_bd = jax.scipy.linalg.block_diag(*([gsrc_a] * EDGE_REP))         # [REP*EA, REP*N]
    mask_a = [jnp.concatenate([m, jnp.ones((N, 1), f32)], axis=0) for m in masks]
    gdsttm_bd = jax.scipy.linalg.block_diag(
        *[(gdst_a * ma).T for ma in mask_a])                              # [REP*N, REP*EA]
    relmask_bd = jnp.tile(relmask_a, (EDGE_REP, 1))                       # [REP*EA, (R+1)*EMB]
    feat_all = jnp.concatenate([feat] * EDGE_REP, axis=0)                 # [REP*N, INP]

    # per-layer packed weights: basis combine + [relations | self] along lanes (hoisted once)
    layer_inputs = []
    for lp in params["layers"]:
        w_rel = jnp.einsum("rb,bio->rio", lp["w_comp"], lp["basis"])      # [R, Din, Dout]
        wrel_wide = jnp.transpose(w_rel, (1, 0, 2)).reshape(
            w_rel.shape[1], R * w_rel.shape[2])                           # [Din, R*Dout]
        wcat = jnp.concatenate([wrel_wide, lp["w_self"]], axis=1)         # [Din, (R+1)*Dout]
        layer_inputs += [wcat.astype(bf16), lp["bias"]]

    # ---- edge-rep head: pos/neg masked means + node mean folded into ONE matrix ----
    gsrc_e = jax.nn.one_hot(src, N, dtype=f32)                            # [E, N]
    gdst_e = jax.nn.one_hot(dst, N, dtype=f32)
    nmasks = [(m == 0.0).astype(f32) for m in masks]                      # torch.logical_not
    inv_p = 1.0 / jnp.maximum(sum(masks), 1.0)                            # clamp(min=1)
    inv_n = 1.0 / jnp.maximum(sum(nmasks), 1.0)
    g_pos_src = jnp.concatenate([(inv_p * m) * gsrc_e for m in masks], axis=1)
    g_pos_dst = jnp.concatenate([(inv_p * m) * gdst_e for m in masks], axis=1)
    g_neg_src = jnp.concatenate([(inv_n * m) * gsrc_e for m in nmasks], axis=1)
    g_neg_dst = jnp.concatenate([(inv_n * m) * gdst_e for m in nmasks], axis=1)
    g_node = jnp.concatenate([jnp.eye(N, dtype=f32) / EDGE_REP] * EDGE_REP, axis=1)
    g_all = jnp.concatenate([g_pos_src, g_pos_dst, g_neg_src, g_neg_dst, g_node],
                            axis=0)                                       # [4E+N, REP*N]

    # lane-pad the output-producing weights so the final stores are 128-lane dense
    fc = params["fc"]
    pad = LANE - OUT_EMB_DIM
    w2_pad = jnp.concatenate([fc["w2"], jnp.zeros((fc["w2"].shape[0], pad), f32)], axis=1)
    b2_pad = jnp.concatenate([fc["b2"], jnp.zeros((1, pad), f32)], axis=1)
    pad_eye = jnp.concatenate([jnp.eye(OUT_EMB_DIM, dtype=f32),
                               jnp.zeros((OUT_EMB_DIM, pad), f32)], axis=1)

    inputs = ([feat_all.astype(bf16), gsrc_bd.astype(bf16), relmask_bd,
               summat.astype(bf16), gdsttm_bd.astype(bf16)]
              + layer_inputs
              + [g_all.astype(bf16), fc["w1"].astype(bf16), fc["b1"],
                 w2_pad.astype(bf16), b2_pad, pad_eye.astype(bf16)])

    vmem = pl.BlockSpec(memory_space=pltpu.MemorySpace.VMEM)
    node_pad, edge_pad = pl.pallas_call(
        make_fused_kernel(NUM_GCN_LAYERS),
        out_shape=(jax.ShapeDtypeStruct((N, LANE), jnp.float32),
                   jax.ShapeDtypeStruct((E, LANE), jnp.float32)),
        in_specs=[vmem] * len(inputs),
        out_specs=(vmem, vmem),
    )(*inputs)
    return node_pad[:, :OUT_EMB_DIM], edge_pad[:, :OUT_EMB_DIM]


# ----------------------------------------------------------------------------
# main
# ----------------------------------------------------------------------------
if __name__ == "__main__":
    root = jax.random.PRNGKey(0)
    k_feat, k_param, k_mask = jax.random.split(root, 3)

    # deterministic small graph: 8 edge pairs over 16 nodes (+ reverse edges)
    src_half = jnp.arange(E_HALF, dtype=jnp.int32) * 2               # 0,2,...,14
    dst_half = (src_half + 1) % N_NODES
    src = jnp.concatenate([src_half, dst_half], axis=0)              # [E]
    dst = jnp.concatenate([dst_half, src_half], axis=0)              # [E]
    rel_half = jnp.arange(E_HALF, dtype=jnp.int32) % AUG_NUM_RELS
    rel = jnp.concatenate([rel_half, rel_half], axis=0)              # [E]

    feat = jax.random.normal(k_feat, (N_NODES, INP_DIM), jnp.float32)  # g.ndata['feat']
    base_mask = jnp.ones((N_EDGES, 1), jnp.float32)                    # g.edata['mask']

    params = init_params(k_param)

    node_repr, edge_repr = multi_rgcn_forward(feat, src, dst, rel, base_mask, params, k_mask)
    node_repr = jax.block_until_ready(node_repr)
    edge_repr = jax.block_until_ready(edge_repr)

    assert node_repr.shape == (N_NODES, OUT_EMB_DIM)
    assert edge_repr.shape == (N_EDGES, OUT_EMB_DIM)
    assert bool(jnp.all(jnp.isfinite(node_repr)))
    assert bool(jnp.all(jnp.isfinite(edge_repr)))
    print("KERNEL_OK")
</pallas_src>

<mosaic_0001>
module attributes {stable_mosaic.version = 11 : i64} {
  func.func @kernel(%arg0: memref<32x8xbf16, #tpu.memory_space<vmem>>, %arg1: memref<64x32xbf16, #tpu.memory_space<vmem>>, %arg2: memref<64x64xf32, #tpu.memory_space<vmem>>, %arg3: memref<64x16xbf16, #tpu.memory_space<vmem>>, %arg4: memref<32x64xbf16, #tpu.memory_space<vmem>>, %arg5: memref<8x64xbf16, #tpu.memory_space<vmem>>, %arg6: memref<1x16xf32, #tpu.memory_space<vmem>>, %arg7: memref<16x64xbf16, #tpu.memory_space<vmem>>, %arg8: memref<1x16xf32, #tpu.memory_space<vmem>>, %arg9: memref<80x32xbf16, #tpu.memory_space<vmem>>, %arg10: memref<128x64xbf16, #tpu.memory_space<vmem>>, %arg11: memref<1x64xf32, #tpu.memory_space<vmem>>, %arg12: memref<64x128xbf16, #tpu.memory_space<vmem>>, %arg13: memref<1x128xf32, #tpu.memory_space<vmem>>, %arg14: memref<32x128xbf16, #tpu.memory_space<vmem>>, %arg15: memref<16x128xf32, #tpu.memory_space<vmem>>, %arg16: memref<16x128xf32, #tpu.memory_space<vmem>>) attributes {dimension_semantics = [], scalar_prefetch = 0 : i64, scratch_operands = 0 : i64, tpu.core_type = #tpu.core_type<tc>} {
    %c0 = arith.constant 0 : index
    %c0_0 = arith.constant 0 : index
    %0 = vector.load %arg1[%c0, %c0_0] : memref<64x32xbf16, #tpu.memory_space<vmem>>, vector<64x32xbf16>
    %c0_1 = arith.constant 0 : index
    %c0_2 = arith.constant 0 : index
    %1 = vector.load %arg2[%c0_1, %c0_2] : memref<64x64xf32, #tpu.memory_space<vmem>>, vector<64x64xf32>
    %c0_3 = arith.constant 0 : index
    %c0_4 = arith.constant 0 : index
    %2 = vector.load %arg3[%c0_3, %c0_4] : memref<64x16xbf16, #tpu.memory_space<vmem>>, vector<64x16xbf16>
    %c0_5 = arith.constant 0 : index
    %c0_6 = arith.constant 0 : index
    %3 = vector.load %arg4[%c0_5, %c0_6] : memref<32x64xbf16, #tpu.memory_space<vmem>>, vector<32x64xbf16>
    %c0_7 = arith.constant 0 : index
    %c0_8 = arith.constant 0 : index
    %4 = vector.load %arg0[%c0_7, %c0_8] : memref<32x8xbf16, #tpu.memory_space<vmem>>, vector<32x8xbf16>
    %c0_9 = arith.constant 0 : index
    %c0_10 = arith.constant 0 : index
    %5 = vector.load %arg5[%c0_9, %c0_10] : memref<8x64xbf16, #tpu.memory_space<vmem>>, vector<8x64xbf16>
    %c0_11 = arith.constant 0 : index
    %c0_12 = arith.constant 0 : index
    %6 = vector.load %arg6[%c0_11, %c0_12] : memref<1x16xf32, #tpu.memory_space<vmem>>, vector<1x16xf32>
    %cst = arith.constant dense<0.000000e+00> : vector<32x64xf32>
    %7 = tpu.matmul %4, %5, %cst {dimension_numbers = #tpu.dot_dimension_numbers<[1], [0], [0], [1], [0, 0, 1, 1], [], []>} : vector<32x8xbf16>, vector<8x64xbf16>, vector<32x64xf32> -> vector<32x64xf32>
    %8 = arith.truncf %7 : vector<32x64xf32> to vector<32x64xbf16>
    %cst_13 = arith.constant dense<0.000000e+00> : vector<64x64xf32>
    %9 = tpu.matmul %0, %8, %cst_13 {dimension_numbers = #tpu.dot_dimension_numbers<[1], [0], [0], [1], [0, 0, 1, 1], [], []>} : vector<64x32xbf16>, vector<32x64xbf16>, vector<64x64xf32> -> vector<64x64xf32>
    %10 = arith.mulf %9, %1 : vector<64x64xf32>
    %11 = arith.truncf %10 : vector<64x64xf32> to vector<64x64xbf16>
    %cst_14 = arith.constant dense<0.000000e+00> : vector<64x16xf32>
    %12 = tpu.matmul %11, %2, %cst_14 {dimension_numbers = #tpu.dot_dimension_numbers<[1], [0], [0], [1], [0, 0, 1, 1], [], []>} : vector<64x64xbf16>, vector<64x16xbf16>, vector<64x16xf32> -> vector<64x16xf32>
    %13 = arith.truncf %12 : vector<64x16xf32> to vector<64x16xbf16>
    %cst_15 = arith.constant dense<0.000000e+00> : vector<32x16xf32>
    %14 = tpu.matmul %3, %13, %cst_15 {dimension_numbers = #tpu.dot_dimension_numbers<[1], [0], [0], [1], [0, 0, 1, 1], [], []>} : vector<32x64xbf16>, vector<64x16xbf16>, vector<32x16xf32> -> vector<32x16xf32>
    %15 = vector.broadcast %6 : vector<1x16xf32> to vector<32x16xf32>
    %16 = arith.addf %14, %15 : vector<32x16xf32>
    %cst_16 = arith.constant 0.000000e+00 : f32
    %17 = vector.broadcast %cst_16 : f32 to vector<32x16xf32>
    %18 = arith.maximumf %16, %17 : vector<32x16xf32>
    %19 = arith.truncf %18 : vector<32x16xf32> to vector<32x16xbf16>
    %c0_17 = arith.constant 0 : index
    %c0_18 = arith.constant 0 : index
    %20 = vector.load %arg7[%c0_17, %c0_18] : memref<16x64xbf16, #tpu.memory_space<vmem>>, vector<16x64xbf16>
    %c0_19 = arith.constant 0 : index
    %c0_20 = arith.constant 0 : index
    %21 = vector.load %arg8[%c0_19, %c0_20] : memref<1x16xf32, #tpu.memory_space<vmem>>, vector<1x16xf32>
    %cst_21 = arith.constant dense<0.000000e+00> : vector<32x64xf32>
    %22 = tpu.matmul %19, %20, %cst_21 {dimension_numbers = #tpu.dot_dimension_numbers<[1], [0], [0], [1], [0, 0, 1, 1], [], []>} : vector<32x16xbf16>, vector<16x64xbf16>, vector<32x64xf32> -> vector<32x64xf32>
    %23 = arith.truncf %22 : vector<32x64xf32> to vector<32x64xbf16>
    %cst_22 = arith.constant dense<0.000000e+00> : vector<64x64xf32>
    %24 = tpu.matmul %0, %23, %cst_22 {dimension_numbers = #tpu.dot_dimension_numbers<[1], [0], [0], [1], [0, 0, 1, 1], [], []>} : vector<64x32xbf16>, vector<32x64xbf16>, vector<64x64xf32> -> vector<64x64xf32>
    %25 = arith.mulf %24, %1 : vector<64x64xf32>
    %26 = arith.truncf %25 : vector<64x64xf32> to vector<64x64xbf16>
    %cst_23 = arith.constant dense<0.000000e+00> : vector<64x16xf32>
    %27 = tpu.matmul %26, %2, %cst_23 {dimension_numbers = #tpu.dot_dimension_numbers<[1], [0], [0], [1], [0, 0, 1, 1], [], []>} : vector<64x64xbf16>, vector<64x16xbf16>, vector<64x16xf32> -> vector<64x16xf32>
    %28 = arith.truncf %27 : vector<64x16xf32> to vector<64x16xbf16>
    %cst_24 = arith.constant dense<0.000000e+00> : vector<32x16xf32>
    %29 = tpu.matmul %3, %28, %cst_24 {dimension_numbers = #tpu.dot_dimension_numbers<[1], [0], [0], [1], [0, 0, 1, 1], [], []>} : vector<32x64xbf16>, vector<64x16xbf16>, vector<32x16xf32> -> vector<32x16xf32>
    %30 = vector.broadcast %21 : vector<1x16xf32> to vector<32x16xf32>
    %31 = arith.addf %29, %30 : vector<32x16xf32>
    %cst_25 = arith.constant 0.000000e+00 : f32
    %32 = vector.broadcast %cst_25 : f32 to vector<32x16xf32>
    %33 = arith.maximumf %31, %32 : vector<32x16xf32>
    %34 = tpu.concatenate %18, %33 in 1 : vector<32x16xf32>, vector<32x16xf32> -> vector<32x32xf32>
    %35 = arith.truncf %34 : vector<32x32xf32> to vector<32x32xbf16>
    %c0_26 = arith.constant 0 : index
    %c0_27 = arith.constant 0 : index
    %36 = vector.load %arg9[%c0_26, %c0_27] : memref<80x32xbf16, #tpu.memory_space<vmem>>, vector<80x32xbf16>
    %cst_28 = arith.constant dense<0.000000e+00> : vector<80x32xf32>
    %37 = tpu.matmul %36, %35, %cst_28 {dimension_numbers = #tpu.dot_dimension_numbers<[1], [0], [0], [1], [0, 0, 1, 1], [], []>} : vector<80x32xbf16>, vector<32x32xbf16>, vector<80x32xf32> -> vector<80x32xf32>
    %c0_29 = arith.constant 0 : index
    %c0_30 = arith.constant 0 : index
    %38 = vector.load %arg11[%c0_29, %c0_30] : memref<1x64xf32, #tpu.memory_space<vmem>>, vector<1x64xf32>
    %39 = vector.extract_strided_slice %37 {offsets = [0, 0], sizes = [16, 32], strides = [1, 1]} : vector<80x32xf32> to vector<16x32xf32>
    %40 = arith.truncf %39 : vector<16x32xf32> to vector<16x32xbf16>
    %c0_31 = arith.constant 0 : index
    %c0_32 = arith.constant 0 : index
    %41 = vector.load %arg10[%c0_31, %c0_32] : memref<128x64xbf16, #tpu.memory_space<vmem>>, vector<32x64xbf16>
    %cst_33 = arith.constant dense<0.000000e+00> : vector<16x64xf32>
    %42 = tpu.matmul %40, %41, %cst_33 {dimension_numbers = #tpu.dot_dimension_numbers<[1], [0], [0], [1], [0, 0, 1, 1], [], []>} : vector<16x32xbf16>, vector<32x64xbf16>, vector<16x64xf32> -> vector<16x64xf32>
    %43 = vector.broadcast %38 : vector<1x64xf32> to vector<16x64xf32>
    %44 = arith.addf %43, %42 : vector<16x64xf32>
    %45 = vector.extract_strided_slice %37 {offsets = [16, 0], sizes = [16, 32], strides = [1, 1]} : vector<80x32xf32> to vector<16x32xf32>
    %46 = arith.truncf %45 : vector<16x32xf32> to vector<16x32xbf16>
    %c32 = arith.constant 32 : index
    %c0_34 = arith.constant 0 : index
    %47 = vector.load %arg10[%c32, %c0_34] : memref<128x64xbf16, #tpu.memory_space<vmem>>, vector<32x64xbf16>
    %cst_35 = arith.constant dense<0.000000e+00> : vector<16x64xf32>
    %48 = tpu.matmul %46, %47, %cst_35 {dimension_numbers = #tpu.dot_dimension_numbers<[1], [0], [0], [1], [0, 0, 1, 1], [], []>} : vector<16x32xbf16>, vector<32x64xbf16>, vector<16x64xf32> -> vector<16x64xf32>
    %49 = arith.addf %44, %48 : vector<16x64xf32>
    %50 = vector.extract_strided_slice %37 {offsets = [32, 0], sizes = [16, 32], strides = [1, 1]} : vector<80x32xf32> to vector<16x32xf32>
    %51 = arith.truncf %50 : vector<16x32xf32> to vector<16x32xbf16>
    %c64 = arith.constant 64 : index
    %c0_36 = arith.constant 0 : index
    %52 = vector.load %arg10[%c64, %c0_36] : memref<128x64xbf16, #tpu.memory_space<vmem>>, vector<32x64xbf16>
    %cst_37 = arith.constant dense<0.000000e+00> : vector<16x64xf32>
    %53 = tpu.matmul %51, %52, %cst_37 {dimension_numbers = #tpu.dot_dimension_numbers<[1], [0], [0], [1], [0, 0, 1, 1], [], []>} : vector<16x32xbf16>, vector<32x64xbf16>, vector<16x64xf32> -> vector<16x64xf32>
    %54 = arith.addf %49, %53 : vector<16x64xf32>
    %55 = vector.extract_strided_slice %37 {offsets = [48, 0], sizes = [16, 32], strides = [1, 1]} : vector<80x32xf32> to vector<16x32xf32>
    %56 = arith.truncf %55 : vector<16x32xf32> to vector<16x32xbf16>
    %c96 = arith.constant 96 : index
    %c0_38 = arith.constant 0 : index
    %57 = vector.load %arg10[%c96, %c0_38] : memref<128x64xbf16, #tpu.memory_space<vmem>>, vector<32x64xbf16>
    %cst_39 = arith.constant dense<0.000000e+00> : vector<16x64xf32>
    %58 = tpu.matmul %56, %57, %cst_39 {dimension_numbers = #tpu.dot_dimension_numbers<[1], [0], [0], [1], [0, 0, 1, 1], [], []>} : vector<16x32xbf16>, vector<32x64xbf16>, vector<16x64xf32> -> vector<16x64xf32>
    %59 = arith.addf %54, %58 : vector<16x64xf32>
    %cst_40 = arith.constant 0.000000e+00 : f32
    %60 = vector.broadcast %cst_40 : f32 to vector<16x64xf32>
    %61 = arith.maximumf %59, %60 : vector<16x64xf32>
    %62 = arith.truncf %61 : vector<16x64xf32> to vector<16x64xbf16>
    %c0_41 = arith.constant 0 : index
    %c0_42 = arith.constant 0 : index
    %63 = vector.load %arg12[%c0_41, %c0_42] : memref<64x128xbf16, #tpu.memory_space<vmem>>, vector<64x128xbf16>
    %cst_43 = arith.constant dense<0.000000e+00> : vector<16x128xf32>
    %64 = tpu.matmul %62, %63, %cst_43 {dimension_numbers = #tpu.dot_dimension_numbers<[1], [0], [0], [1], [0, 0, 1, 1], [], []>} : vector<16x64xbf16>, vector<64x128xbf16>, vector<16x128xf32> -> vector<16x128xf32>
    %c0_44 = arith.constant 0 : index
    %c0_45 = arith.constant 0 : index
    %65 = vector.load %arg13[%c0_44, %c0_45] : memref<1x128xf32, #tpu.memory_space<vmem>>, vector<1x128xf32>
    %66 = vector.broadcast %65 : vector<1x128xf32> to vector<16x128xf32>
    %67 = arith.addf %64, %66 : vector<16x128xf32>
    %c0_46 = arith.constant 0 : index
    %c0_47 = arith.constant 0 : index
    %68 = vector.load %arg16[%c0_46, %c0_47] : memref<16x128xf32, #tpu.memory_space<vmem>>, vector<16x128xf32>
    tpu.vector_store %arg16[%c0_46, %c0_47], %67 {strides = array<i32>} : memref<16x128xf32, #tpu.memory_space<vmem>>, vector<16x128xf32>,
    %69 = vector.extract_strided_slice %37 {offsets = [64, 0], sizes = [16, 32], strides = [1, 1]} : vector<80x32xf32> to vector<16x32xf32>
    %70 = arith.truncf %69 : vector<16x32xf32> to vector<16x32xbf16>
    %c0_48 = arith.constant 0 : index
    %c0_49 = arith.constant 0 : index
    %71 = vector.load %arg14[%c0_48, %c0_49] : memref<32x128xbf16, #tpu.memory_space<vmem>>, vector<32x128xbf16>
    %cst_50 = arith.constant dense<0.000000e+00> : vector<16x128xf32>
    %72 = tpu.matmul %70, %71, %cst_50 {dimension_numbers = #tpu.dot_dimension_numbers<[1], [0], [0], [1], [0, 0, 1, 1], [], []>} : vector<16x32xbf16>, vector<32x128xbf16>, vector<16x128xf32> -> vector<16x128xf32>
    %c0_51 = arith.constant 0 : index
    %c0_52 = arith.constant 0 : index
    %73 = vector.load %arg15[%c0_51, %c0_52] : memref<16x128xf32, #tpu.memory_space<vmem>>, vector<16x128xf32>
    tpu.vector_store %arg15[%c0_51, %c0_52], %72 {strides = array<i32>} : memref<16x128xf32, #tpu.memory_space<vmem>>, vector<16x128xf32>,
    return
  }
}

</mosaic_0001>

<llo_original>
// kernel: multi_rgcn_forward.1
$region0: #{multi_rgcn_forward.1}
  #allocation0 [shape = 'u32[]', space=smem, size = 0x4, offset = 0x4, fixed_abs, tag = 'smem constant byte address 0x4 - core index']
  #allocation1 [shape = 'u32[144,128]{1,0:T(1,128)}', space=vmem, size = 0x12000, scoped, tag = 'internal scratch']
  %s0 = inlined_call_operand.vmem [shape: bf16[32,8], index: 0, kind: input, shape index: {}]
  %s1 = inlined_call_operand.vmem [shape: bf16[64,32], index: 1, kind: input, shape index: {}]
  %s2 = inlined_call_operand.vmem [shape: f32[64,64], index: 2, kind: input, shape index: {}]
  %s3 = inlined_call_operand.vmem [shape: bf16[64,16], index: 3, kind: input, shape index: {}]
  %s4 = inlined_call_operand.vmem [shape: bf16[32,64], index: 4, kind: input, shape index: {}]
  %s5 = inlined_call_operand.vmem [shape: bf16[8,64], index: 5, kind: input, shape index: {}]
  %s6 = inlined_call_operand.vmem [shape: f32[1,16], index: 6, kind: input, shape index: {}]
  %s7 = inlined_call_operand.vmem [shape: bf16[16,64], index: 7, kind: input, shape index: {}]
  %s8 = inlined_call_operand.vmem [shape: f32[1,16], index: 8, kind: input, shape index: {}]
  %s9 = inlined_call_operand.vmem [shape: bf16[80,32], index: 9, kind: input, shape index: {}]
  %s10 = inlined_call_operand.vmem [shape: bf16[128,64], index: 10, kind: input, shape index: {}]
  %s11 = inlined_call_operand.vmem [shape: f32[1,64], index: 11, kind: input, shape index: {}]
  %s12 = inlined_call_operand.vmem [shape: bf16[64,128], index: 12, kind: input, shape index: {}]
  %s13 = inlined_call_operand.vmem [shape: f32[1,128], index: 13, kind: input, shape index: {}]
  %s14 = inlined_call_operand.vmem [shape: bf16[32,128], index: 14, kind: input, shape index: {}]
  %s15 = inlined_call_operand.hbm [shape: f32[16,128], index: 15, kind: output, shape index: {0}]
  %s16 = inlined_call_operand.hbm [shape: f32[16,128], index: 16, kind: output, shape index: {1}]
  %17 = xla_tuple %s15, %s16
  %s18 = sld [smem:[#allocation0]]
  $region78: #{multi_rgcn_forward.1} parent=0
    _
  %s20 = ssub.s32 1, %s18
  %s21 = scalar_select 0, %s20, %s18
  $region1: #{multi_rgcn_forward.1} parent=0
    #allocation2 [shape = 'u8[8192]{0}', space=vmem, size = 0x2000, scoped, tag = 'output window, operand 0, single buffered']
    #allocation3 [shape = 's32[1]{0}', space=sflag, size = 0x4, scoped, tag = 'scoped memory for multi_rgcn_forward.1']
    #allocation4 [shape = 'u8[8192]{0}', space=vmem, size = 0x2000, scoped, tag = 'output window, operand 1, single buffered']
    #allocation5 [shape = 's32[1]{0}', space=sflag, size = 0x4, scoped, tag = 'scoped memory for multi_rgcn_forward.1']
    %22 = vsyncpa [#allocation3], 0
    %23 = vsyncpa [#allocation5], 0
    // Predicated region
    $region2: #{multi_rgcn_forward.1} parent=1 // pred_check
      _
    $region3: #{multi_rgcn_forward.1} parent=1 // pred_check_branch
      %25 = sbr.rel (0) target = $region5
    $region4: #{multi_rgcn_forward.1} parent=1 // pred_region
      _
    $region5: #{multi_rgcn_forward.1} parent=1 // pred_fallthru
      _
    // Predicated region
    $region6: #{multi_rgcn_forward.1} parent=1 // pred_check
      _
    $region7: #{multi_rgcn_forward.1} parent=1 // pred_check_branch
      %27 = sbr.rel (0) target = $region9
    $region8: #{multi_rgcn_forward.1} parent=1 // pred_region
      _
    $region9: #{multi_rgcn_forward.1} parent=1 // pred_fallthru
      _
    // Predicated region
    $region10: #{multi_rgcn_forward.1} parent=1 // pred_check
      _
    $region11: #{multi_rgcn_forward.1} parent=1 // pred_check_branch
      %29 = sbr.rel (0) target = $region13
    $region12: #{multi_rgcn_forward.1} parent=1 // pred_region
      _
    $region13: #{multi_rgcn_forward.1} parent=1 // pred_fallthru
      _
    // Predicated region
    $region14: #{multi_rgcn_forward.1} parent=1 // pred_check
      _
    $region15: #{multi_rgcn_forward.1} parent=1 // pred_check_branch
      %31 = sbr.rel (0) target = $region17
    $region16: #{multi_rgcn_forward.1} parent=1 // pred_region
      _
    $region17: #{multi_rgcn_forward.1} parent=1 // pred_fallthru
      _
    // Predicated region
    $region18: #{multi_rgcn_forward.1} parent=1 // pred_check
      _
    $region19: #{multi_rgcn_forward.1} parent=1 // pred_check_branch
      %33 = sbr.rel (0) target = $region21
    $region20: #{multi_rgcn_forward.1} parent=1 // pred_region
      _
    $region21: #{multi_rgcn_forward.1} parent=1 // pred_fallthru
      _
    // Predicated region
    $region22: #{multi_rgcn_forward.1} parent=1 // pred_check
      _
    $region23: #{multi_rgcn_forward.1} parent=1 // pred_check_branch
      %35 = sbr.rel (0) target = $region25
    $region24: #{multi_rgcn_forward.1} parent=1 // pred_region
      _
    $region25: #{multi_rgcn_forward.1} parent=1 // pred_fallthru
      _
    // Predicated region
    $region26: #{multi_rgcn_forward.1} parent=1 // pred_check
      _
    $region27: #{multi_rgcn_forward.1} parent=1 // pred_check_branch
      %37 = sbr.rel (0) target = $region29
    $region28: #{multi_rgcn_forward.1} parent=1 // pred_region
      _
    $region29: #{multi_rgcn_forward.1} parent=1 // pred_fallthru
      _
    // Predicated region
    $region30: #{multi_rgcn_forward.1} parent=1 // pred_check
      _
    $region31: #{multi_rgcn_forward.1} parent=1 // pred_check_branch
      %39 = sbr.rel (0) target = $region33
    $region32: #{multi_rgcn_forward.1} parent=1 // pred_region
      _
    $region33: #{multi_rgcn_forward.1} parent=1 // pred_fallthru
      _
    // Predicated region
    $region34: #{multi_rgcn_forward.1} parent=1 // pred_check
      _
    $region35: #{multi_rgcn_forward.1} parent=1 // pred_check_branch
      %41 = sbr.rel (0) target = $region37
    $region36: #{multi_rgcn_forward.1} parent=1 // pred_region
      _
    $region37: #{multi_rgcn_forward.1} parent=1 // pred_fallthru
      _
    // Predicated region
    $region38: #{multi_rgcn_forward.1} parent=1 // pred_check
      _
    $region39: #{multi_rgcn_forward.1} parent=1 // pred_check_branch
      %43 = sbr.rel (0) target = $region41
    $region40: #{multi_rgcn_forward.1} parent=1 // pred_region
      _
    $region41: #{multi_rgcn_forward.1} parent=1 // pred_fallthru
      _
    // Predicated region
    $region42: #{multi_rgcn_forward.1} parent=1 // pred_check
      _
    $region43: #{multi_rgcn_forward.1} parent=1 // pred_check_branch
      %45 = sbr.rel (0) target = $region45
    $region44: #{multi_rgcn_forward.1} parent=1 // pred_region
      _
    $region45: #{multi_rgcn_forward.1} parent=1 // pred_fallthru
      _
    // Predicated region
    $region46: #{multi_rgcn_forward.1} parent=1 // pred_check
      _
    $region47: #{multi_rgcn_forward.1} parent=1 // pred_check_branch
      %47 = sbr.rel (0) target = $region49
    $region48: #{multi_rgcn_forward.1} parent=1 // pred_region
      _
    $region49: #{multi_rgcn_forward.1} parent=1 // pred_fallthru
      _
    // Predicated region
    $region50: #{multi_rgcn_forward.1} parent=1 // pred_check
      _
    $region51: #{multi_rgcn_forward.1} parent=1 // pred_check_branch
      %49 = sbr.rel (0) target = $region53
    $region52: #{multi_rgcn_forward.1} parent=1 // pred_region
      _
    $region53: #{multi_rgcn_forward.1} parent=1 // pred_fallthru
      _
    // Predicated region
    $region54: #{multi_rgcn_forward.1} parent=1 // pred_check
      _
    $region55: #{multi_rgcn_forward.1} parent=1 // pred_check_branch
      %51 = sbr.rel (0) target = $region57
    $region56: #{multi_rgcn_forward.1} parent=1 // pred_region
      _
    $region57: #{multi_rgcn_forward.1} parent=1 // pred_fallthru
      _
    // Predicated region
    $region58: #{multi_rgcn_forward.1} parent=1 // pred_check
      _
    $region59: #{multi_rgcn_forward.1} parent=1 // pred_check_branch
      %53 = sbr.rel (0) target = $region61
    $region60: #{multi_rgcn_forward.1} parent=1 // pred_region
      _
    $region61: #{multi_rgcn_forward.1} parent=1 // pred_fallthru
      _
    %v55 = vld [vmem:[%s1] sm:$0xf]
    %v56 = vld [vmem:[%s1 + $0x4] sm:$0xf]
    %v57 = vld [vmem:[%s1 + $0x8] sm:$0xf]
    %v58 = vld [vmem:[%s1 + $0xc] sm:$0xf]
    %v59 = vld [vmem:[%s1 + $0x10] sm:$0xf]
    %v60 = vld [vmem:[%s1 + $0x14] sm:$0xf]
    %v61 = vld [vmem:[%s1 + $0x18] sm:$0xf]
    %v62 = vld [vmem:[%s1 + $0x1c] sm:$0xf]
    %v63 = vld [vmem:[%s2] sm:$0xff]
    %v64 = vld [vmem:[%s2 + $0x8] sm:$0xff]
    %v65 = vld [vmem:[%s2 + $0x10] sm:$0xff]
    %v66 = vld [vmem:[%s2 + $0x18] sm:$0xff]
    %v67 = vld [vmem:[%s2 + $0x20] sm:$0xff]
    %v68 = vld [vmem:[%s2 + $0x28] sm:$0xff]
    %v69 = vld [vmem:[%s2 + $0x30] sm:$0xff]
    %v70 = vld [vmem:[%s2 + $0x38] sm:$0xff]
    %v71 = vld [vmem:[%s3] sm:$0xf]
    %v72 = vld [vmem:[%s3 + $0x4] sm:$0xf]
    %v73 = vld [vmem:[%s3 + $0x8] sm:$0xf]
    %v74 = vld [vmem:[%s3 + $0xc] sm:$0xf]
    %v75 = vld [vmem:[%s3 + $0x10] sm:$0xf]
    %v76 = vld [vmem:[%s3 + $0x14] sm:$0xf]
    %v77 = vld [vmem:[%s3 + $0x18] sm:$0xf]
    %v78 = vld [vmem:[%s3 + $0x1c] sm:$0xf]
    %v79 = vld [vmem:[%s4] sm:$0xf]
    %v80 = vld [vmem:[%s4 + $0x4] sm:$0xf]
    %v81 = vld [vmem:[%s4 + $0x8] sm:$0xf]
    %v82 = vld [vmem:[%s4 + $0xc] sm:$0xf]
    %v83 = vld [vmem:[%s0] sm:$0xf]
    %v84 = vld [vmem:[%s0 + $0x4] sm:$0xf]
    %v85 = vld [vmem:[%s0 + $0x8] sm:$0xf]
    %v86 = vld [vmem:[%s0 + $0xc] sm:$0xf]
    %v87 = vld [vmem:[%s5] sm:$0xf]
    %v88 = vld [vmem:[%s6] sm:$0x1]
    %v93 = vunpack.c.l.b16 %v83
    %v94 = vunpack.c.l.b16 %v84
    %v95 = vunpack.c.l.b16 %v85
    %v96 = vunpack.c.l.b16 %v86
    %v97 = vpack.c.b16 %v94, %v93
    %v98 = vpack.c.b16 %v96, %v95
    %vm99 = vcmask 64512
    %v101 = vsel %vm99, %v97, 0
    %v104 = vsel %vm99, %v98, 0
    %vm106 = vcmask 1043456
    %v108 = vsel %vm106, %v87, 0
    %110 = vmatprep.subr.bf16.mxu0 0
    %111 = vmatpush1.bf16.msra.mxu0 %v108
    %112 = vmatprep.subr.bf16.mxu0 0
    %113 = vmatpush1.bf16.msra.mxu0 0
    %114 = vmatprep.subr.bf16.mxu0 0
    %115 = vmatpush1.bf16.msra.mxu0 0
    %116 = vmatprep.subr.bf16.mxu0 0
    %117 = vmatpush1.bf16.msra.mxu0 0
    %118 = vmatprep.subr.bf16.mxu0 0
    %119 = vmatpush1.bf16.msra.mxu0 0
    %120 = vmatprep.subr.bf16.mxu0 0
    %121 = vmatpush1.bf16.msra.mxu0 0
    %122 = vmatprep.subr.bf16.mxu0 0
    %123 = vmatpush1.bf16.msra.mxu0 0
    %124 = vmatprep.subr.bf16.mxu0 0
    %125 = vmatpush1.bf16.msra.mxu0 0
    %126 = vmatprep.subr.bf16.mxu0 0
    %127 = vmatpush1.bf16.msra.mxu0 0
    %128 = vmatprep.subr.bf16.mxu0 0
    %129 = vmatpush1.bf16.msra.mxu0 0
    %130 = vmatprep.subr.bf16.mxu0 0
    %131 = vmatpush1.bf16.msra.mxu0 0
    %132 = vmatprep.subr.bf16.mxu0 0
    %133 = vmatpush1.bf16.msra.mxu0 0
    %134 = vmatprep.subr.bf16.mxu0 0
    %135 = vmatpush1.bf16.msra.mxu0 0
    %136 = vmatprep.subr.bf16.mxu0 0
    %137 = vmatpush1.bf16.msra.mxu0 0
    %138 = vmatprep.subr.bf16.mxu0 0
    %139 = vmatpush1.bf16.msra.mxu0 0
    %140 = vmatprep.subr.bf16.mxu0 0
    %141 = vmatpush1.bf16.msra.mxu0 0
    %142 = vmatprep.mubr.bf16.mxu0 0
    %143 = vmatmul.mubr.bf16.gmra.mrb[0].mxu0 %v101
    %v144 = vpop.f32.mrb[0].mxu0
    %v145 = vadd.f32 0.0, %v144
    %v146 = vpop.f32.mrb[0].mxu0
    %v147 = vpop.f32.mrb[0].mxu0
    %v148 = vadd.f32 0.0, %v147
    %v149 = vpop.f32.mrb[0].mxu0
    %150 = vmatprep.mubr.bf16.mxu0 0
    %151 = vmatmul.mubr.bf16.gmra.mrb[0].mxu0 %v104
    %v152 = vpop.f32.mrb[0].mxu0
    %v153 = vadd.f32 0.0, %v152
    %v154 = vpop.f32.mrb[0].mxu0
    %v155 = vpop.f32.mrb[0].mxu0
    %v156 = vadd.f32 0.0, %v155
    %v157 = vpop.f32.mrb[0].mxu0
    %158 = vdwg.mxu0
    %v159 = vpack.c.bf16 %v148, %v145
    %v160 = vpack.c.bf16 %v156, %v153
    %v169 = vunpack.c.l.b16 %v55
    %v170 = vunpack.c.l.b16 %v56
    %v171 = vunpack.c.l.b16 %v57
    %v172 = vunpack.c.l.b16 %v58
    %v173 = vunpack.c.l.b16 %v59
    %v174 = vunpack.c.l.b16 %v60
    %v175 = vunpack.c.l.b16 %v61
    %v176 = vunpack.c.l.b16 %v62
    %v177 = vpack.c.b16 %v170, %v169
    %v178 = vpack.c.b16 %v172, %v171
    %v179 = vpack.c.b16 %v174, %v173
    %v180 = vpack.c.b16 %v176, %v175
    %vm181 = vcmask 261120
    %v183 = vsel %vm181, %v177, 0
    %v186 = vsel %vm181, %v178, 0
    %v189 = vsel %vm181, %v179, 0
    %v192 = vsel %vm181, %v180, 0
    %194 = vmatprep.subr.bf16.mxu0 0
    %195 = vmatpush1.bf16.msra.mxu0 %v159
    %196 = vmatprep.subr.bf16.mxu0 0
    %197 = vmatpush1.bf16.msra.mxu0 %v160
    %198 = vmatprep.subr.bf16.mxu0 0
    %199 = vmatpush1.bf16.msra.mxu0 0
    %200 = vmatprep.subr.bf16.mxu0 0
    %201 = vmatpush1.bf16.msra.mxu0 0
    %202 = vmatprep.subr.bf16.mxu0 0
    %203 = vmatpush1.bf16.msra.mxu0 0
    %204 = vmatprep.subr.bf16.mxu0 0
    %205 = vmatpush1.bf16.msra.mxu0 0
    %206 = vmatprep.subr.bf16.mxu0 0
    %207 = vmatpush1.bf16.msra.mxu0 0
    %208 = vmatprep.subr.bf16.mxu0 0
    %209 = vmatpush1.bf16.msra.mxu0 0
    %210 = vmatprep.subr.bf16.mxu0 0
    %211 = vmatpush1.bf16.msra.mxu0 0
    %212 = vmatprep.subr.bf16.mxu0 0
    %213 = vmatpush1.bf16.msra.mxu0 0
    %214 = vmatprep.subr.bf16.mxu0 0
    %215 = vmatpush1.bf16.msra.mxu0 0
    %216 = vmatprep.subr.bf16.mxu0 0
    %217 = vmatpush1.bf16.msra.mxu0 0
    %218 = vmatprep.subr.bf16.mxu0 0
    %219 = vmatpush1.bf16.msra.mxu0 0
    %220 = vmatprep.subr.bf16.mxu0 0
    %221 = vmatpush1.bf16.msra.mxu0 0
    %222 = vmatprep.subr.bf16.mxu0 0
    %223 = vmatpush1.bf16.msra.mxu0 0
    %224 = vmatprep.subr.bf16.mxu0 0
    %225 = vmatpush1.bf16.msra.mxu0 0
    %226 = vmatprep.mubr.bf16.mxu0 0
    %227 = vmatmul.mubr.bf16.gmra.mrb[0].mxu0 %v183
    %v228 = vpop.f32.mrb[0].mxu0
    %v229 = vadd.f32 0.0, %v228
    %v230 = vpop.f32.mrb[0].mxu0
    %v231 = vpop.f32.mrb[0].mxu0
    %v232 = vadd.f32 0.0, %v231
    %v233 = vpop.f32.mrb[0].mxu0
    %234 = vmatprep.mubr.bf16.mxu0 0
    %235 = vmatmul.mubr.bf16.gmra.mrb[0].mxu0 %v186
    %v236 = vpop.f32.mrb[0].mxu0
    %v237 = vadd.f32 0.0, %v236
    %v238 = vpop.f32.mrb[0].mxu0
    %v239 = vpop.f32.mrb[0].mxu0
    %v240 = vadd.f32 0.0, %v239
    %v241 = vpop.f32.mrb[0].mxu0
    %242 = vmatprep.mubr.bf16.mxu0 0
    %243 = vmatmul.mubr.bf16.gmra.mrb[0].mxu0 %v189
    %v244 = vpop.f32.mrb[0].mxu0
    %v245 = vadd.f32 0.0, %v244
    %v246 = vpop.f32.mrb[0].mxu0
    %v247 = vpop.f32.mrb[0].mxu0
    %v248 = vadd.f32 0.0, %v247
    %v249 = vpop.f32.mrb[0].mxu0
    %250 = vmatprep.mubr.bf16.mxu0 0
    %251 = vmatmul.mubr.bf16.gmra.mrb[0].mxu0 %v192
    %v252 = vpop.f32.mrb[0].mxu0
    %v253 = vadd.f32 0.0, %v252
    %v254 = vpop.f32.mrb[0].mxu0
    %v255 = vpop.f32.mrb[0].mxu0
    %v256 = vadd.f32 0.0, %v255
    %v257 = vpop.f32.mrb[0].mxu0
    %258 = vdwg.mxu0
    %v259 = vmul.f32 %v229, %v63
    %v260 = vmul.f32 %v232, %v64
    %v261 = vmul.f32 %v237, %v65
    %v262 = vmul.f32 %v240, %v66
    %v263 = vmul.f32 %v245, %v67
    %v264 = vmul.f32 %v248, %v68
    %v265 = vmul.f32 %v253, %v69
    %v266 = vmul.f32 %v256, %v70
    %v267 = vpack.c.bf16 %v260, %v259
    %v268 = vpack.c.bf16 %v262, %v261
    %v269 = vpack.c.bf16 %v264, %v263
    %v270 = vpack.c.bf16 %v266, %v265
    %v279 = vunpack.c.l.b16 %v71
    %v280 = vunpack.c.l.b16 %v72
    %v281 = vunpack.c.l.b16 %v73
    %v282 = vunpack.c.l.b16 %v74
    %v283 = vunpack.c.l.b16 %v75
    %v284 = vunpack.c.l.b16 %v76
    %v285 = vunpack.c.l.b16 %v77
    %v286 = vunpack.c.l.b16 %v78
    %v287 = vpack.c.b16 %v280, %v279
    %v288 = vpack.c.b16 %v282, %v281
    %v289 = vpack.c.b16 %v284, %v283
    %v290 = vpack.c.b16 %v286, %v285
    %vm295 = vcmask 523264
    %v297 = vsel %vm295, %v267, 0
    %v300 = vsel %vm295, %v268, 0
    %v303 = vsel %vm295, %v269, 0
    %v306 = vsel %vm295, %v270, 0
    %308 = vmatprep.subr.bf16.mxu0 0
    %309 = vmatpush1.bf16.msra.mxu0 %v287
    %310 = vmatprep.subr.bf16.mxu0 0
    %311 = vmatpush1.bf16.msra.mxu0 %v288
    %312 = vmatprep.subr.bf16.mxu0 0
    %313 = vmatpush1.bf16.msra.mxu0 %v289
    %314 = vmatprep.subr.bf16.mxu0 0
    %315 = vmatpush1.bf16.msra.mxu0 %v290
    %316 = vmatprep.subr.bf16.mxu0 0
    %317 = vmatpush1.bf16.msra.mxu0 0
    %318 = vmatprep.subr.bf16.mxu0 0
    %319 = vmatpush1.bf16.msra.mxu0 0
    %320 = vmatprep.subr.bf16.mxu0 0
    %321 = vmatpush1.bf16.msra.mxu0 0
    %322 = vmatprep.subr.bf16.mxu0 0
    %323 = vmatpush1.bf16.msra.mxu0 0
    %324 = vmatprep.subr.bf16.mxu0 0
    %325 = vmatpush1.bf16.msra.mxu0 0
    %326 = vmatprep.subr.bf16.mxu0 0
    %327 = vmatpush1.bf16.msra.mxu0 0
    %328 = vmatprep.subr.bf16.mxu0 0
    %329 = vmatpush1.bf16.msra.mxu0 0
    %330 = vmatprep.subr.bf16.mxu0 0
    %331 = vmatpush1.bf16.msra.mxu0 0
    %332 = vmatprep.subr.bf16.mxu0 0
    %333 = vmatpush1.bf16.msra.mxu0 0
    %334 = vmatprep.subr.bf16.mxu0 0
    %335 = vmatpush1.bf16.msra.mxu0 0
    %336 = vmatprep.subr.bf16.mxu0 0
    %337 = vmatpush1.bf16.msra.mxu0 0
    %338 = vmatprep.subr.bf16.mxu0 0
    %339 = vmatpush1.bf16.msra.mxu0 0
    %340 = vmatprep.mubr.bf16.mxu0 0
    %341 = vmatmul.mubr.bf16.gmra.mrb[0].mxu0 %v297
    %v342 = vpop.f32.mrb[0].mxu0
    %v343 = vadd.f32 0.0, %v342
    %v344 = vpop.f32.mrb[0].mxu0
    %v345 = vpop.f32.mrb[0].mxu0
    %v346 = vadd.f32 0.0, %v345
    %v347 = vpop.f32.mrb[0].mxu0
    %348 = vmatprep.mubr.bf16.mxu0 0
    %349 = vmatmul.mubr.bf16.gmra.mrb[0].mxu0 %v300
    %v350 = vpop.f32.mrb[0].mxu0
    %v351 = vadd.f32 0.0, %v350
    %v352 = vpop.f32.mrb[0].mxu0
    %v353 = vpop.f32.mrb[0].mxu0
    %v354 = vadd.f32 0.0, %v353
    %v355 = vpop.f32.mrb[0].mxu0
    %356 = vmatprep.mubr.bf16.mxu0 0
    %357 = vmatmul.mubr.bf16.gmra.mrb[0].mxu0 %v303
    %v358 = vpop.f32.mrb[0].mxu0
    %v359 = vadd.f32 0.0, %v358
    %v360 = vpop.f32.mrb[0].mxu0
    %v361 = vpop.f32.mrb[0].mxu0
    %v362 = vadd.f32 0.0, %v361
    %v363 = vpop.f32.mrb[0].mxu0
    %364 = vmatprep.mubr.bf16.mxu0 0
    %365 = vmatmul.mubr.bf16.gmra.mrb[0].mxu0 %v306
    %v366 = vpop.f32.mrb[0].mxu0
    %v367 = vadd.f32 0.0, %v366
    %v368 = vpop.f32.mrb[0].mxu0
    %v369 = vpop.f32.mrb[0].mxu0
    %v370 = vadd.f32 0.0, %v369
    %v371 = vpop.f32.mrb[0].mxu0
    %372 = vdwg.mxu0
    %v373 = vpack.c.bf16 %v346, %v343
    %v374 = vpack.c.bf16 %v354, %v351
    %v375 = vpack.c.bf16 %v362, %v359
    %v376 = vpack.c.bf16 %v370, %v367
    %v378 = vlaneseq
    %v379 = vshrl.u32 %v378, 7
    %v380 = vsub.s32 0, %v379
    %v381 = vrot.slane %v88, %v380
    %v387 = vunpack.c.l.b16 %v79
    %v388 = vunpack.c.l.b16 %v80
    %v389 = vunpack.c.l.b16 %v81
    %v390 = vunpack.c.l.b16 %v82
    %v391 = vpack.c.b16 %v388, %v387
    %v392 = vpack.c.b16 %v390, %v389
    %v394 = vsel %vm295, %v391, 0
    %v397 = vsel %vm295, %v392, 0
    %399 = vmatprep.subr.bf16.mxu0 0
    %400 = vmatpush1.bf16.msra.mxu0 %v373
    %401 = vmatprep.subr.bf16.mxu0 0
    %402 = vmatpush1.bf16.msra.mxu0 %v374
    %403 = vmatprep.subr.bf16.mxu0 0
    %404 = vmatpush1.bf16.msra.mxu0 %v375
    %405 = vmatprep.subr.bf16.mxu0 0
    %406 = vmatpush1.bf16.msra.mxu0 %v376
    %407 = vmatprep.subr.bf16.mxu0 0
    %408 = vmatpush1.bf16.msra.mxu0 0
    %409 = vmatprep.subr.bf16.mxu0 0
    %410 = vmatpush1.bf16.msra.mxu0 0
    %411 = vmatprep.subr.bf16.mxu0 0
    %412 = vmatpush1.bf16.msra.mxu0 0
    %413 = vmatprep.subr.bf16.mxu0 0
    %414 = vmatpush1.bf16.msra.mxu0 0
    %415 = vmatprep.subr.bf16.mxu0 0
    %416 = vmatpush1.bf16.msra.mxu0 0
    %417 = vmatprep.subr.bf16.mxu0 0
    %418 = vmatpush1.bf16.msra.mxu0 0
    %419 = vmatprep.subr.bf16.mxu0 0
    %420 = vmatpush1.bf16.msra.mxu0 0
    %421 = vmatprep.subr.bf16.mxu0 0
    %422 = vmatpush1.bf16.msra.mxu0 0
    %423 = vmatprep.subr.bf16.mxu0 0
    %424 = vmatpush1.bf16.msra.mxu0 0
    %425 = vmatprep.subr.bf16.mxu0 0
    %426 = vmatpush1.bf16.msra.mxu0 0
    %427 = vmatprep.subr.bf16.mxu0 0
    %428 = vmatpush1.bf16.msra.mxu0 0
    %429 = vmatprep.subr.bf16.mxu0 0
    %430 = vmatpush1.bf16.msra.mxu0 0
    %431 = vmatprep.mubr.bf16.mxu0 0
    %432 = vmatmul.mubr.bf16.gmra.mrb[0].mxu0 %v394
    %v433 = vpop.f32.mrb[0].mxu0
    %v434 = vadd.f32 %v381, %v433
    %v435 = vpop.f32.mrb[0].mxu0
    %v436 = vpop.f32.mrb[0].mxu0
    %v437 = vadd.f32 %v381, %v436
    %v438 = vpop.f32.mrb[0].mxu0
    %439 = vmatprep.mubr.bf16.mxu0 0
    %440 = vmatmul.mubr.bf16.gmra.mrb[0].mxu0 %v397
    %v441 = vpop.f32.mrb[0].mxu0
    %v442 = vadd.f32 %v381, %v441
    %v443 = vpop.f32.mrb[0].mxu0
    %v444 = vpop.f32.mrb[0].mxu0
    %v445 = vadd.f32 %v381, %v444
    %v446 = vpop.f32.mrb[0].mxu0
    %447 = vdwg.mxu0
    %v448 = vmax.f32 %v434, 0.0
    %v449 = vmax.f32 %v437, 0.0
    %v450 = vmax.f32 %v442, 0.0
    %v451 = vmax.f32 %v445, 0.0
    %v452 = vpack.c.bf16 %v449, %v448
    %v453 = vpack.c.bf16 %v451, %v450
    %v454 = vld [vmem:[%s7] sm:$0xf]
    %v455 = vld [vmem:[%s7 + $0x4] sm:$0xf]
    %v456 = vld [vmem:[%s8] sm:$0x1]
    %v459 = vunpack.c.l.b16 %v454
    %v460 = vunpack.c.l.b16 %v455
    %v461 = vpack.c.b16 %v460, %v459
    %vm463 = vcmask 130048
    %v465 = vsel %vm463, %v452, 0
    %v468 = vsel %vm463, %v453, 0
    %470 = vmatprep.subr.bf16.mxu0 0
    %471 = vmatpush1.bf16.msra.mxu0 %v461
    %472 = vmatprep.subr.bf16.mxu0 0
    %473 = vmatpush1.bf16.msra.mxu0 0
    %474 = vmatprep.subr.bf16.mxu0 0
    %475 = vmatpush1.bf16.msra.mxu0 0
    %476 = vmatprep.subr.bf16.mxu0 0
    %477 = vmatpush1.bf16.msra.mxu0 0
    %478 = vmatprep.subr.bf16.mxu0 0
    %479 = vmatpush1.bf16.msra.mxu0 0
    %480 = vmatprep.subr.bf16.mxu0 0
    %481 = vmatpush1.bf16.msra.mxu0 0
    %482 = vmatprep.subr.bf16.mxu0 0
    %483 = vmatpush1.bf16.msra.mxu0 0
    %484 = vmatprep.subr.bf16.mxu0 0
    %485 = vmatpush1.bf16.msra.mxu0 0
    %486 = vmatprep.subr.bf16.mxu0 0
    %487 = vmatpush1.bf16.msra.mxu0 0
    %488 = vmatprep.subr.bf16.mxu0 0
    %489 = vmatpush1.bf16.msra.mxu0 0
    %490 = vmatprep.subr.bf16.mxu0 0
    %491 = vmatpush1.bf16.msra.mxu0 0
    %492 = vmatprep.subr.bf16.mxu0 0
    %493 = vmatpush1.bf16.msra.mxu0 0
    %494 = vmatprep.subr.bf16.mxu0 0
    %495 = vmatpush1.bf16.msra.mxu0 0
    %496 = vmatprep.subr.bf16.mxu0 0
    %497 = vmatpush1.bf16.msra.mxu0 0
    %498 = vmatprep.subr.bf16.mxu0 0
    %499 = vmatpush1.bf16.msra.mxu0 0
    %500 = vmatprep.subr.bf16.mxu0 0
    %501 = vmatpush1.bf16.msra.mxu0 0
    %502 = vmatprep.mubr.bf16.mxu0 0
    %503 = vmatmul.mubr.bf16.gmra.mrb[0].mxu0 %v465
    %v504 = vpop.f32.mrb[0].mxu0
    %v505 = vadd.f32 0.0, %v504
    %v506 = vpop.f32.mrb[0].mxu0
    %v507 = vpop.f32.mrb[0].mxu0
    %v508 = vadd.f32 0.0, %v507
    %v509 = vpop.f32.mrb[0].mxu0
    %510 = vmatprep.mubr.bf16.mxu0 0
    %511 = vmatmul.mubr.bf16.gmra.mrb[0].mxu0 %v468
    %v512 = vpop.f32.mrb[0].mxu0
    %v513 = vadd.f32 0.0, %v512
    %v514 = vpop.f32.mrb[0].mxu0
    %v515 = vpop.f32.mrb[0].mxu0
    %v516 = vadd.f32 0.0, %v515
    %v517 = vpop.f32.mrb[0].mxu0
    %518 = vdwg.mxu0
    %v519 = vpack.c.bf16 %v508, %v505
    %v520 = vpack.c.bf16 %v516, %v513
    %521 = vmatprep.subr.bf16.mxu0 0
    %522 = vmatpush1.bf16.msra.mxu0 %v519
    %523 = vmatprep.subr.bf16.mxu0 0
    %524 = vmatpush1.bf16.msra.mxu0 %v520
    %525 = vmatprep.subr.bf16.mxu0 0
    %526 = vmatpush1.bf16.msra.mxu0 0
    %527 = vmatprep.subr.bf16.mxu0 0
    %528 = vmatpush1.bf16.msra.mxu0 0
    %529 = vmatprep.subr.bf16.mxu0 0
    %530 = vmatpush1.bf16.msra.mxu0 0
    %531 = vmatprep.subr.bf16.mxu0 0
    %532 = vmatpush1.bf16.msra.mxu0 0
    %533 = vmatprep.subr.bf16.mxu0 0
    %534 = vmatpush1.bf16.msra.mxu0 0
    %535 = vmatprep.subr.bf16.mxu0 0
    %536 = vmatpush1.bf16.msra.mxu0 0
    %537 = vmatprep.subr.bf16.mxu0 0
    %538 = vmatpush1.bf16.msra.mxu0 0
    %539 = vmatprep.subr.bf16.mxu0 0
    %540 = vmatpush1.bf16.msra.mxu0 0
    %541 = vmatprep.subr.bf16.mxu0 0
    %542 = vmatpush1.bf16.msra.mxu0 0
    %543 = vmatprep.subr.bf16.mxu0 0
    %544 = vmatpush1.bf16.msra.mxu0 0
    %545 = vmatprep.subr.bf16.mxu0 0
    %546 = vmatpush1.bf16.msra.mxu0 0
    %547 = vmatprep.subr.bf16.mxu0 0
    %548 = vmatpush1.bf16.msra.mxu0 0
    %549 = vmatprep.subr.bf16.mxu0 0
    %550 = vmatpush1.bf16.msra.mxu0 0
    %551 = vmatprep.subr.bf16.mxu0 0
    %552 = vmatpush1.bf16.msra.mxu0 0
    %553 = vmatprep.mubr.bf16.mxu0 0
    %554 = vmatmul.mubr.bf16.gmra.mrb[0].mxu0 %v183
    %v555 = vpop.f32.mrb[0].mxu0
    %v556 = vadd.f32 0.0, %v555
    %v557 = vpop.f32.mrb[0].mxu0
    %v558 = vpop.f32.mrb[0].mxu0
    %v559 = vadd.f32 0.0, %v558
    %v560 = vpop.f32.mrb[0].mxu0
    %561 = vmatprep.mubr.bf16.mxu0 0
    %562 = vmatmul.mubr.bf16.gmra.mrb[0].mxu0 %v186
    %v563 = vpop.f32.mrb[0].mxu0
    %v564 = vadd.f32 0.0, %v563
    %v565 = vpop.f32.mrb[0].mxu0
    %v566 = vpop.f32.mrb[0].mxu0
    %v567 = vadd.f32 0.0, %v566
    %v568 = vpop.f32.mrb[0].mxu0
    %569 = vmatprep.mubr.bf16.mxu0 0
    %570 = vmatmul.mubr.bf16.gmra.mrb[0].mxu0 %v189
    %v571 = vpop.f32.mrb[0].mxu0
    %v572 = vadd.f32 0.0, %v571
    %v573 = vpop.f32.mrb[0].mxu0
    %v574 = vpop.f32.mrb[0].mxu0
    %v575 = vadd.f32 0.0, %v574
    %v576 = vpop.f32.mrb[0].mxu0
    %577 = vmatprep.mubr.bf16.mxu0 0
    %578 = vmatmul.mubr.bf16.gmra.mrb[0].mxu0 %v192
    %v579 = vpop.f32.mrb[0].mxu0
    %v580 = vadd.f32 0.0, %v579
    %v581 = vpop.f32.mrb[0].mxu0
    %v582 = vpop.f32.mrb[0].mxu0
    %v583 = vadd.f32 0.0, %v582
    %v584 = vpop.f32.mrb[0].mxu0
    %585 = vdwg.mxu0
    %v586 = vmul.f32 %v556, %v63
    %v587 = vmul.f32 %v559, %v64
    %v588 = vmul.f32 %v564, %v65
    %v589 = vmul.f32 %v567, %v66
    %v590 = vmul.f32 %v572, %v67
    %v591 = vmul.f32 %v575, %v68
    %v592 = vmul.f32 %v580, %v69
    %v593 = vmul.f32 %v583, %v70
    %v594 = vpack.c.bf16 %v587, %v586
    %v595 = vpack.c.bf16 %v589, %v588
    %v596 = vpack.c.bf16 %v591, %v590
    %v597 = vpack.c.bf16 %v593, %v592
    %v599 = vsel %vm295, %v594, 0
    %v602 = vsel %vm295, %v595, 0
    %v605 = vsel %vm295, %v596, 0
    %v608 = vsel %vm295, %v597, 0
    %610 = vmatprep.subr.bf16.mxu0 0
    %611 = vmatpush1.bf16.msra.mxu0 %v287
    %612 = vmatprep.subr.bf16.mxu0 0
    %613 = vmatpush1.bf16.msra.mxu0 %v288
    %614 = vmatprep.subr.bf16.mxu0 0
    %615 = vmatpush1.bf16.msra.mxu0 %v289
    %616 = vmatprep.subr.bf16.mxu0 0
    %617 = vmatpush1.bf16.msra.mxu0 %v290
    %618 = vmatprep.subr.bf16.mxu0 0
    %619 = vmatpush1.bf16.msra.mxu0 0
    %620 = vmatprep.subr.bf16.mxu0 0
    %621 = vmatpush1.bf16.msra.mxu0 0
    %622 = vmatprep.subr.bf16.mxu0 0
    %623 = vmatpush1.bf16.msra.mxu0 0
    %624 = vmatprep.subr.bf16.mxu0 0
    %625 = vmatpush1.bf16.msra.mxu0 0
    %626 = vmatprep.subr.bf16.mxu0 0
    %627 = vmatpush1.bf16.msra.mxu0 0
    %628 = vmatprep.subr.bf16.mxu0 0
    %629 = vmatpush1.bf16.msra.mxu0 0
    %630 = vmatprep.subr.bf16.mxu0 0
    %631 = vmatpush1.bf16.msra.mxu0 0
    %632 = vmatprep.subr.bf16.mxu0 0
    %633 = vmatpush1.bf16.msra.mxu0 0
    %634 = vmatprep.subr.bf16.mxu0 0
    %635 = vmatpush1.bf16.msra.mxu0 0
    %636 = vmatprep.subr.bf16.mxu0 0
    %637 = vmatpush1.bf16.msra.mxu0 0
    %638 = vmatprep.subr.bf16.mxu0 0
    %639 = vmatpush1.bf16.msra.mxu0 0
    %640 = vmatprep.subr.bf16.mxu0 0
    %641 = vmatpush1.bf16.msra.mxu0 0
    %642 = vmatprep.mubr.bf16.mxu0 0
    %643 = vmatmul.mubr.bf16.gmra.mrb[0].mxu0 %v599
    %v644 = vpop.f32.mrb[0].mxu0
    %v645 = vadd.f32 0.0, %v644
    %v646 = vpop.f32.mrb[0].mxu0
    %v647 = vpop.f32.mrb[0].mxu0
    %v648 = vadd.f32 0.0, %v647
    %v649 = vpop.f32.mrb[0].mxu0
    %650 = vmatprep.mubr.bf16.mxu0 0
    %651 = vmatmul.mubr.bf16.gmra.mrb[0].mxu0 %v602
    %v652 = vpop.f32.mrb[0].mxu0
    %v653 = vadd.f32 0.0, %v652
    %v654 = vpop.f32.mrb[0].mxu0
    %v655 = vpop.f32.mrb[0].mxu0
    %v656 = vadd.f32 0.0, %v655
    %v657 = vpop.f32.mrb[0].mxu0
    %658 = vmatprep.mubr.bf16.mxu0 0
    %659 = vmatmul.mubr.bf16.gmra.mrb[0].mxu0 %v605
    %v660 = vpop.f32.mrb[0].mxu0
    %v661 = vadd.f32 0.0, %v660
    %v662 = vpop.f32.mrb[0].mxu0
    %v663 = vpop.f32.mrb[0].mxu0
    %v664 = vadd.f32 0.0, %v663
    %v665 = vpop.f32.mrb[0].mxu0
    %666 = vmatprep.mubr.bf16.mxu0 0
    %667 = vmatmul.mubr.bf16.gmra.mrb[0].mxu0 %v608
    %v668 = vpop.f32.mrb[0].mxu0
    %v669 = vadd.f32 0.0, %v668
    %v670 = vpop.f32.mrb[0].mxu0
    %v671 = vpop.f32.mrb[0].mxu0
    %v672 = vadd.f32 0.0, %v671
    %v673 = vpop.f32.mrb[0].mxu0
    %674 = vdwg.mxu0
    %v675 = vpack.c.bf16 %v648, %v645
    %v676 = vpack.c.bf16 %v656, %v653
    %v677 = vpack.c.bf16 %v664, %v661
    %v678 = vpack.c.bf16 %v672, %v669
    %v680 = vlaneseq
    %v681 = vshrl.u32 %v680, 7
    %v682 = vsub.s32 0, %v681
    %v683 = vrot.slane %v456, %v682
    %685 = vmatprep.subr.bf16.mxu0 0
    %686 = vmatpush1.bf16.msra.mxu0 %v675
    %687 = vmatprep.subr.bf16.mxu0 0
    %688 = vmatpush1.bf16.msra.mxu0 %v676
    %689 = vmatprep.subr.bf16.mxu0 0
    %690 = vmatpush1.bf16.msra.mxu0 %v677
    %691 = vmatprep.subr.bf16.mxu0 0
    %692 = vmatpush1.bf16.msra.mxu0 %v678
    %693 = vmatprep.subr.bf16.mxu0 0
    %694 = vmatpush1.bf16.msra.mxu0 0
    %695 = vmatprep.subr.bf16.mxu0 0
    %696 = vmatpush1.bf16.msra.mxu0 0
    %697 = vmatprep.subr.bf16.mxu0 0
    %698 = vmatpush1.bf16.msra.mxu0 0
    %699 = vmatprep.subr.bf16.mxu0 0
    %700 = vmatpush1.bf16.msra.mxu0 0
    %701 = vmatprep.subr.bf16.mxu0 0
    %702 = vmatpush1.bf16.msra.mxu0 0
    %703 = vmatprep.subr.bf16.mxu0 0
    %704 = vmatpush1.bf16.msra.mxu0 0
    %705 = vmatprep.subr.bf16.mxu0 0
    %706 = vmatpush1.bf16.msra.mxu0 0
    %707 = vmatprep.subr.bf16.mxu0 0
    %708 = vmatpush1.bf16.msra.mxu0 0
    %709 = vmatprep.subr.bf16.mxu0 0
    %710 = vmatpush1.bf16.msra.mxu0 0
    %711 = vmatprep.subr.bf16.mxu0 0
    %712 = vmatpush1.bf16.msra.mxu0 0
    %713 = vmatprep.subr.bf16.mxu0 0
    %714 = vmatpush1.bf16.msra.mxu0 0
    %715 = vmatprep.subr.bf16.mxu0 0
    %716 = vmatpush1.bf16.msra.mxu0 0
    %717 = vmatprep.mubr.bf16.mxu0 0
    %718 = vmatmul.mubr.bf16.gmra.mrb[0].mxu0 %v394
    %v719 = vpop.f32.mrb[0].mxu0
    %v720 = vadd.f32 %v683, %v719
    %v721 = vpop.f32.mrb[0].mxu0
    %v722 = vpop.f32.mrb[0].mxu0
    %v723 = vadd.f32 %v683, %v722
    %v724 = vpop.f32.mrb[0].mxu0
    %725 = vmatprep.mubr.bf16.mxu0 0
    %726 = vmatmul.mubr.bf16.gmra.mrb[0].mxu0 %v397
    %v727 = vpop.f32.mrb[0].mxu0
    %v728 = vadd.f32 %v683, %v727
    %v729 = vpop.f32.mrb[0].mxu0
    %v730 = vpop.f32.mrb[0].mxu0
    %v731 = vadd.f32 %v683, %v730
    %v732 = vpop.f32.mrb[0].mxu0
    %733 = vdwg.mxu0
    %v734 = vmax.f32 %v720, 0.0
    %v735 = vmax.f32 %v723, 0.0
    %v736 = vmax.f32 %v728, 0.0
    %v737 = vmax.f32 %v731, 0.0
    %742 = vrot.lane.b32.xlu0 %v734, 16
    %v743 = vpop.permute.xlu0 %742
    %744 = vrot.lane.b32.xlu0 %v735, 16
    %v745 = vpop.permute.xlu0 %744
    %746 = vrot.lane.b32.xlu0 %v736, 16
    %v747 = vpop.permute.xlu0 %746
    %748 = vrot.lane.b32.xlu0 %v737, 16
    %v749 = vpop.permute.xlu0 %748
    %v754 = vsel %vm463, %v448, %v743
    %v755 = vsel %vm463, %v449, %v745
    %v756 = vsel %vm463, %v450, %v747
    %v757 = vsel %vm463, %v451, %v749
    %v758 = vpack.c.bf16 %v755, %v754
    %v759 = vpack.c.bf16 %v757, %v756
    %v760 = vld [vmem:[%s9] sm:$0xf]
    %v761 = vld [vmem:[%s9 + $0x4] sm:$0xf]
    %v762 = vld [vmem:[%s9 + $0x8] sm:$0xf]
    %v763 = vld [vmem:[%s9 + $0xc] sm:$0xf]
    %v764 = vld [vmem:[%s9 + $0x10] sm:$0xf]
    %v765 = vld [vmem:[%s9 + $0x14] sm:$0xf]
    %v766 = vld [vmem:[%s9 + $0x18] sm:$0xf]
    %v767 = vld [vmem:[%s9 + $0x1c] sm:$0xf]
    %v768 = vld [vmem:[%s9 + $0x20] sm:$0xf]
    %v769 = vld [vmem:[%s9 + $0x24] sm:$0xf]
    %v780 = vunpack.c.l.b16 %v760
    %v781 = vunpack.c.l.b16 %v761
    %v782 = vunpack.c.l.b16 %v762
    %v783 = vunpack.c.l.b16 %v763
    %v784 = vunpack.c.l.b16 %v764
    %v785 = vunpack.c.l.b16 %v765
    %v786 = vunpack.c.l.b16 %v766
    %v787 = vunpack.c.l.b16 %v767
    %v788 = vunpack.c.l.b16 %v768
    %v789 = vunpack.c.l.b16 %v769
    %v790 = vpack.c.b16 %v781, %v780
    %v791 = vpack.c.b16 %v783, %v782
    %v792 = vpack.c.b16 %v785, %v784
    %v793 = vpack.c.b16 %v787, %v786
    %v794 = vpack.c.b16 %v789, %v788
    %v796 = vsel %vm181, %v790, 0
    %v799 = vsel %vm181, %v791, 0
    %v802 = vsel %vm181, %v792, 0
    %v805 = vsel %vm181, %v793, 0
    %v808 = vsel %vm181, %v794, 0
    %810 = vmatprep.subr.bf16.mxu0 0
    %811 = vmatpush1.bf16.msra.mxu0 %v758
    %812 = vmatprep.subr.bf16.mxu0 0
    %813 = vmatpush1.bf16.msra.mxu0 %v759
    %814 = vmatprep.subr.bf16.mxu0 0
    %815 = vmatpush1.bf16.msra.mxu0 0
    %816 = vmatprep.subr.bf16.mxu0 0
    %817 = vmatpush1.bf16.msra.mxu0 0
    %818 = vmatprep.subr.bf16.mxu0 0
    %819 = vmatpush1.bf16.msra.mxu0 0
    %820 = vmatprep.subr.bf16.mxu0 0
    %821 = vmatpush1.bf16.msra.mxu0 0
    %822 = vmatprep.subr.bf16.mxu0 0
    %823 = vmatpush1.bf16.msra.mxu0 0
    %824 = vmatprep.subr.bf16.mxu0 0
    %825 = vmatpush1.bf16.msra.mxu0 0
    %826 = vmatprep.subr.bf16.mxu0 0
    %827 = vmatpush1.bf16.msra.mxu0 0
    %828 = vmatprep.subr.bf16.mxu0 0
    %829 = vmatpush1.bf16.msra.mxu0 0
    %830 = vmatprep.subr.bf16.mxu0 0
    %831 = vmatpush1.bf16.msra.mxu0 0
    %832 = vmatprep.subr.bf16.mxu0 0
    %833 = vmatpush1.bf16.msra.mxu0 0
    %834 = vmatprep.subr.bf16.mxu0 0
    %835 = vmatpush1.bf16.msra.mxu0 0
    %836 = vmatprep.subr.bf16.mxu0 0
    %837 = vmatpush1.bf16.msra.mxu0 0
    %838 = vmatprep.subr.bf16.mxu0 0
    %839 = vmatpush1.bf16.msra.mxu0 0
    %840 = vmatprep.subr.bf16.mxu0 0
    %841 = vmatpush1.bf16.msra.mxu0 0
    %842 = vmatprep.mubr.bf16.mxu0 0
    %843 = vmatmul.mubr.bf16.gmra.mrb[0].mxu0 %v796
    %v844 = vpop.f32.mrb[0].mxu0
    %v845 = vadd.f32 0.0, %v844
    %v846 = vpop.f32.mrb[0].mxu0
    %v847 = vpop.f32.mrb[0].mxu0
    %v848 = vadd.f32 0.0, %v847
    %v849 = vpop.f32.mrb[0].mxu0
    %850 = vmatprep.mubr.bf16.mxu0 0
    %851 = vmatmul.mubr.bf16.gmra.mrb[0].mxu0 %v799
    %v852 = vpop.f32.mrb[0].mxu0
    %v853 = vadd.f32 0.0, %v852
    %v854 = vpop.f32.mrb[0].mxu0
    %v855 = vpop.f32.mrb[0].mxu0
    %v856 = vadd.f32 0.0, %v855
    %v857 = vpop.f32.mrb[0].mxu0
    %858 = vmatprep.mubr.bf16.mxu0 0
    %859 = vmatmul.mubr.bf16.gmra.mrb[0].mxu0 %v802
    %v860 = vpop.f32.mrb[0].mxu0
    %v861 = vadd.f32 0.0, %v860
    %v862 = vpop.f32.mrb[0].mxu0
    %v863 = vpop.f32.mrb[0].mxu0
    %v864 = vadd.f32 0.0, %v863
    %v865 = vpop.f32.mrb[0].mxu0
    %866 = vmatprep.mubr.bf16.mxu0 0
    %867 = vmatmul.mubr.bf16.gmra.mrb[0].mxu0 %v805
    %v868 = vpop.f32.mrb[0].mxu0
    %v869 = vadd.f32 0.0, %v868
    %v870 = vpop.f32.mrb[0].mxu0
    %v871 = vpop.f32.mrb[0].mxu0
    %v872 = vadd.f32 0.0, %v871
    %v873 = vpop.f32.mrb[0].mxu0
    %874 = vmatprep.mubr.bf16.mxu0 0
    %875 = vmatmul.mubr.bf16.gmra.mrb[0].mxu0 %v808
    %v876 = vpop.f32.mrb[0].mxu0
    %v877 = vadd.f32 0.0, %v876
    %v878 = vpop.f32.mrb[0].mxu0
    %v879 = vpop.f32.mrb[0].mxu0
    %v880 = vadd.f32 0.0, %v879
    %v881 = vpop.f32.mrb[0].mxu0
    %882 = vdwg.mxu0
    %v883 = vld [vmem:[%s11] sm:$0x1]
    %v884 = vpack.c.bf16 %v848, %v845
    %v885 = vld [vmem:[%s10] sm:$0xf]
    %v886 = vld [vmem:[%s10 + $0x4] sm:$0xf]
    %v887 = vld [vmem:[%s10 + $0x8] sm:$0xf]
    %v888 = vld [vmem:[%s10 + $0xc] sm:$0xf]
    %v893 = vunpack.c.l.b16 %v885
    %v894 = vunpack.c.l.b16 %v886
    %v895 = vunpack.c.l.b16 %v887
    %v896 = vunpack.c.l.b16 %v888
    %v897 = vpack.c.b16 %v894, %v893
    %v898 = vpack.c.b16 %v896, %v895
    %v902 = vsel %vm181, %v884, 0
    %904 = vmatprep.subr.bf16.mxu0 0
    %905 = vmatpush1.bf16.msra.mxu0 %v897
    %906 = vmatprep.subr.bf16.mxu0 0
    %907 = vmatpush1.bf16.msra.mxu0 %v898
    %908 = vmatprep.subr.bf16.mxu0 0
    %909 = vmatpush1.bf16.msra.mxu0 0
    %910 = vmatprep.subr.bf16.mxu0 0
    %911 = vmatpush1.bf16.msra.mxu0 0
    %912 = vmatprep.subr.bf16.mxu0 0
    %913 = vmatpush1.bf16.msra.mxu0 0
    %914 = vmatprep.subr.bf16.mxu0 0
    %915 = vmatpush1.bf16.msra.mxu0 0
    %916 = vmatprep.subr.bf16.mxu0 0
    %917 = vmatpush1.bf16.msra.mxu0 0
    %918 = vmatprep.subr.bf16.mxu0 0
    %919 = vmatpush1.bf16.msra.mxu0 0
    %920 = vmatprep.subr.bf16.mxu0 0
    %921 = vmatpush1.bf16.msra.mxu0 0
    %922 = vmatprep.subr.bf16.mxu0 0
    %923 = vmatpush1.bf16.msra.mxu0 0
    %924 = vmatprep.subr.bf16.mxu0 0
    %925 = vmatpush1.bf16.msra.mxu0 0
    %926 = vmatprep.subr.bf16.mxu0 0
    %927 = vmatpush1.bf16.msra.mxu0 0
    %928 = vmatprep.subr.bf16.mxu0 0
    %929 = vmatpush1.bf16.msra.mxu0 0
    %930 = vmatprep.subr.bf16.mxu0 0
    %931 = vmatpush1.bf16.msra.mxu0 0
    %932 = vmatprep.subr.bf16.mxu0 0
    %933 = vmatpush1.bf16.msra.mxu0 0
    %934 = vmatprep.subr.bf16.mxu0 0
    %935 = vmatpush1.bf16.msra.mxu0 0
    %936 = vmatprep.mubr.bf16.mxu0 0
    %937 = vmatmul.mubr.bf16.gmra.mrb[0].mxu0 %v902
    %v938 = vpop.f32.mrb[0].mxu0
    %v939 = vadd.f32 0.0, %v938
    %v940 = vpop.f32.mrb[0].mxu0
    %v941 = vpop.f32.mrb[0].mxu0
    %v942 = vadd.f32 0.0, %v941
    %v943 = vpop.f32.mrb[0].mxu0
    %944 = vdwg.mxu0
    %v946 = vlaneseq
    %v947 = vshrl.u32 %v946, 7
    %v948 = vsub.s32 0, %v947
    %v949 = vrot.slane %v883, %v948
    %v951 = vadd.f32 %v949, %v939
    %v952 = vadd.f32 %v949, %v942
    %v953 = vpack.c.bf16 %v856, %v853
    %v954 = vld [vmem:[%s10 + $0x10] sm:$0xf]
    %v955 = vld [vmem:[%s10 + $0x14] sm:$0xf]
    %v956 = vld [vmem:[%s10 + $0x18] sm:$0xf]
    %v957 = vld [vmem:[%s10 + $0x1c] sm:$0xf]
    %v962 = vunpack.c.l.b16 %v954
    %v963 = vunpack.c.l.b16 %v955
    %v964 = vunpack.c.l.b16 %v956
    %v965 = vunpack.c.l.b16 %v957
    %v966 = vpack.c.b16 %v963, %v962
    %v967 = vpack.c.b16 %v965, %v964
    %v971 = vsel %vm181, %v953, 0
    %973 = vmatprep.subr.bf16.mxu0 0
    %974 = vmatpush1.bf16.msra.mxu0 %v966
    %975 = vmatprep.subr.bf16.mxu0 0
    %976 = vmatpush1.bf16.msra.mxu0 %v967
    %977 = vmatprep.subr.bf16.mxu0 0
    %978 = vmatpush1.bf16.msra.mxu0 0
    %979 = vmatprep.subr.bf16.mxu0 0
    %980 = vmatpush1.bf16.msra.mxu0 0
    %981 = vmatprep.subr.bf16.mxu0 0
    %982 = vmatpush1.bf16.msra.mxu0 0
    %983 = vmatprep.subr.bf16.mxu0 0
    %984 = vmatpush1.bf16.msra.mxu0 0
    %985 = vmatprep.subr.bf16.mxu0 0
    %986 = vmatpush1.bf16.msra.mxu0 0
    %987 = vmatprep.subr.bf16.mxu0 0
    %988 = vmatpush1.bf16.msra.mxu0 0
    %989 = vmatprep.subr.bf16.mxu0 0
    %990 = vmatpush1.bf16.msra.mxu0 0
    %991 = vmatprep.subr.bf16.mxu0 0
    %992 = vmatpush1.bf16.msra.mxu0 0
    %993 = vmatprep.subr.bf16.mxu0 0
    %994 = vmatpush1.bf16.msra.mxu0 0
    %995 = vmatprep.subr.bf16.mxu0 0
    %996 = vmatpush1.bf16.msra.mxu0 0
    %997 = vmatprep.subr.bf16.mxu0 0
    %998 = vmatpush1.bf16.msra.mxu0 0
    %999 = vmatprep.subr.bf16.mxu0 0
    %1000 = vmatpush1.bf16.msra.mxu0 0
    %1001 = vmatprep.subr.bf16.mxu0 0
    %1002 = vmatpush1.bf16.msra.mxu0 0
    %1003 = vmatprep.subr.bf16.mxu0 0
    %1004 = vmatpush1.bf16.msra.mxu0 0
    %1005 = vmatprep.mubr.bf16.mxu0 0
    %1006 = vmatmul.mubr.bf16.gmra.mrb[0].mxu0 %v971
    %v1007 = vpop.f32.mrb[0].mxu0
    %v1008 = vadd.f32 0.0, %v1007
    %v1009 = vpop.f32.mrb[0].mxu0
    %v1010 = vpop.f32.mrb[0].mxu0
    %v1011 = vadd.f32 0.0, %v1010
    %v1012 = vpop.f32.mrb[0].mxu0
    %1013 = vdwg.mxu0
    %v1014 = vadd.f32 %v951, %v1008
    %v1015 = vadd.f32 %v952, %v1011
    %v1016 = vpack.c.bf16 %v864, %v861
    %v1017 = vld [vmem:[%s10 + $0x20] sm:$0xf]
    %v1018 = vld [vmem:[%s10 + $0x24] sm:$0xf]
    %v1019 = vld [vmem:[%s10 + $0x28] sm:$0xf]
    %v1020 = vld [vmem:[%s10 + $0x2c] sm:$0xf]
    %v1025 = vunpack.c.l.b16 %v1017
    %v1026 = vunpack.c.l.b16 %v1018
    %v1027 = vunpack.c.l.b16 %v1019
    %v1028 = vunpack.c.l.b16 %v1020
    %v1029 = vpack.c.b16 %v1026, %v1025
    %v1030 = vpack.c.b16 %v1028, %v1027
    %v1034 = vsel %vm181, %v1016, 0
    %1036 = vmatprep.subr.bf16.mxu0 0
    %1037 = vmatpush1.bf16.msra.mxu0 %v1029
    %1038 = vmatprep.subr.bf16.mxu0 0
    %1039 = vmatpush1.bf16.msra.mxu0 %v1030
    %1040 = vmatprep.subr.bf16.mxu0 0
    %1041 = vmatpush1.bf16.msra.mxu0 0
    %1042 = vmatprep.subr.bf16.mxu0 0
    %1043 = vmatpush1.bf16.msra.mxu0 0
    %1044 = vmatprep.subr.bf16.mxu0 0
    %1045 = vmatpush1.bf16.msra.mxu0 0
    %1046 = vmatprep.subr.bf16.mxu0 0
    %1047 = vmatpush1.bf16.msra.mxu0 0
    %1048 = vmatprep.subr.bf16.mxu0 0
    %1049 = vmatpush1.bf16.msra.mxu0 0
    %1050 = vmatprep.subr.bf16.mxu0 0
    %1051 = vmatpush1.bf16.msra.mxu0 0
    %1052 = vmatprep.subr.bf16.mxu0 0
    %1053 = vmatpush1.bf16.msra.mxu0 0
    %1054 = vmatprep.subr.bf16.mxu0 0
    %1055 = vmatpush1.bf16.msra.mxu0 0
    %1056 = vmatprep.subr.bf16.mxu0 0
    %1057 = vmatpush1.bf16.msra.mxu0 0
    %1058 = vmatprep.subr.bf16.mxu0 0
    %1059 = vmatpush1.bf16.msra.mxu0 0
    %1060 = vmatprep.subr.bf16.mxu0 0
    %1061 = vmatpush1.bf16.msra.mxu0 0
    %1062 = vmatprep.subr.bf16.mxu0 0
    %1063 = vmatpush1.bf16.msra.mxu0 0
    %1064 = vmatprep.subr.bf16.mxu0 0
    %1065 = vmatpush1.bf16.msra.mxu0 0
    %1066 = vmatprep.subr.bf16.mxu0 0
    %1067 = vmatpush1.bf16.msra.mxu0 0
    %1068 = vmatprep.mubr.bf16.mxu0 0
    %1069 = vmatmul.mubr.bf16.gmra.mrb[0].mxu0 %v1034
    %v1070 = vpop.f32.mrb[0].mxu0
    %v1071 = vadd.f32 0.0, %v1070
    %v1072 = vpop.f32.mrb[0].mxu0
    %v1073 = vpop.f32.mrb[0].mxu0
    %v1074 = vadd.f32 0.0, %v1073
    %v1075 = vpop.f32.mrb[0].mxu0
    %1076 = vdwg.mxu0
    %v1077 = vadd.f32 %v1014, %v1071
    %v1078 = vadd.f32 %v1015, %v1074
    %v1079 = vpack.c.bf16 %v872, %v869
    %v1080 = vld [vmem:[%s10 + $0x30] sm:$0xf]
    %v1081 = vld [vmem:[%s10 + $0x34] sm:$0xf]
    %v1082 = vld [vmem:[%s10 + $0x38] sm:$0xf]
    %v1083 = vld [vmem:[%s10 + $0x3c] sm:$0xf]
    %v1088 = vunpack.c.l.b16 %v1080
    %v1089 = vunpack.c.l.b16 %v1081
    %v1090 = vunpack.c.l.b16 %v1082
    %v1091 = vunpack.c.l.b16 %v1083
    %v1092 = vpack.c.b16 %v1089, %v1088
    %v1093 = vpack.c.b16 %v1091, %v1090
    %v1097 = vsel %vm181, %v1079, 0
    %1099 = vmatprep.subr.bf16.mxu0 0
    %1100 = vmatpush1.bf16.msra.mxu0 %v1092
    %1101 = vmatprep.subr.bf16.mxu0 0
    %1102 = vmatpush1.bf16.msra.mxu0 %v1093
    %1103 = vmatprep.subr.bf16.mxu0 0
    %1104 = vmatpush1.bf16.msra.mxu0 0
    %1105 = vmatprep.subr.bf16.mxu0 0
    %1106 = vmatpush1.bf16.msra.mxu0 0
    %1107 = vmatprep.subr.bf16.mxu0 0
    %1108 = vmatpush1.bf16.msra.mxu0 0
    %1109 = vmatprep.subr.bf16.mxu0 0
    %1110 = vmatpush1.bf16.msra.mxu0 0
    %1111 = vmatprep.subr.bf16.mxu0 0
    %1112 = vmatpush1.bf16.msra.mxu0 0
    %1113 = vmatprep.subr.bf16.mxu0 0
    %1114 = vmatpush1.bf16.msra.mxu0 0
    %1115 = vmatprep.subr.bf16.mxu0 0
    %1116 = vmatpush1.bf16.msra.mxu0 0
    %1117 = vmatprep.subr.bf16.mxu0 0
    %1118 = vmatpush1.bf16.msra.mxu0 0
    %1119 = vmatprep.subr.bf16.mxu0 0
    %1120 = vmatpush1.bf16.msra.mxu0 0
    %1121 = vmatprep.subr.bf16.mxu0 0
    %1122 = vmatpush1.bf16.msra.mxu0 0
    %1123 = vmatprep.subr.bf16.mxu0 0
    %1124 = vmatpush1.bf16.msra.mxu0 0
    %1125 = vmatprep.subr.bf16.mxu0 0
    %1126 = vmatpush1.bf16.msra.mxu0 0
    %1127 = vmatprep.subr.bf16.mxu0 0
    %1128 = vmatpush1.bf16.msra.mxu0 0
    %1129 = vmatprep.subr.bf16.mxu0 0
    %1130 = vmatpush1.bf16.msra.mxu0 0
    %1131 = vmatprep.mubr.bf16.mxu0 0
    %1132 = vmatmul.mubr.bf16.gmra.mrb[0].mxu0 %v1097
    %v1133 = vpop.f32.mrb[0].mxu0
    %v1134 = vadd.f32 0.0, %v1133
    %v1135 = vpop.f32.mrb[0].mxu0
    %v1136 = vpop.f32.mrb[0].mxu0
    %v1137 = vadd.f32 0.0, %v1136
    %v1138 = vpop.f32.mrb[0].mxu0
    %1139 = vdwg.mxu0
    %v1140 = vadd.f32 %v1077, %v1134
    %v1141 = vadd.f32 %v1078, %v1137
    %v1142 = vmax.f32 %v1140, 0.0
    %v1143 = vmax.f32 %v1141, 0.0
    %v1144 = vpack.c.bf16 %v1143, %v1142
    %v1145 = vld [vmem:[%s12] sm:$0xf]
    %v1146 = vld [vmem:[%s12 + $0x4] sm:$0xf]
    %v1147 = vld [vmem:[%s12 + $0x8] sm:$0xf]
    %v1148 = vld [vmem:[%s12 + $0xc] sm:$0xf]
    %v1149 = vld [vmem:[%s12 + $0x10] sm:$0xf]
    %v1150 = vld [vmem:[%s12 + $0x14] sm:$0xf]
    %v1151 = vld [vmem:[%s12 + $0x18] sm:$0xf]
    %v1152 = vld [vmem:[%s12 + $0x1c] sm:$0xf]
    %v1153 = vld [vmem:[%s13] sm:$0x1]
    %v1155 = vlaneseq
    %v1156 = vshrl.u32 %v1155, 7
    %v1157 = vsub.s32 0, %v1156
    %v1158 = vrot.slane %v1153, %v1157
    %v1168 = vunpack.c.l.b16 %v1145
    %v1169 = vunpack.c.l.b16 %v1146
    %v1170 = vunpack.c.l.b16 %v1147
    %v1171 = vunpack.c.l.b16 %v1148
    %v1172 = vunpack.c.l.b16 %v1149
    %v1173 = vunpack.c.l.b16 %v1150
    %v1174 = vunpack.c.l.b16 %v1151
    %v1175 = vunpack.c.l.b16 %v1152
    %v1176 = vpack.c.b16 %v1169, %v1168
    %v1177 = vpack.c.b16 %v1171, %v1170
    %v1178 = vpack.c.b16 %v1173, %v1172
    %v1179 = vpack.c.b16 %v1175, %v1174
    %v1185 = vsel %vm295, %v1144, 0
    %1187 = vmatprep.subr.bf16.mxu0 0
    %1188 = vmatpush1.bf16.msra.mxu0 %v1176
    %1189 = vmatprep.subr.bf16.mxu0 0
    %1190 = vmatpush1.bf16.msra.mxu0 %v1177
    %1191 = vmatprep.subr.bf16.mxu0 0
    %1192 = vmatpush1.bf16.msra.mxu0 %v1178
    %1193 = vmatprep.subr.bf16.mxu0 0
    %1194 = vmatpush1.bf16.msra.mxu0 %v1179
    %1195 = vmatprep.subr.bf16.mxu0 0
    %1196 = vmatpush1.bf16.msra.mxu0 0
    %1197 = vmatprep.subr.bf16.mxu0 0
    %1198 = vmatpush1.bf16.msra.mxu0 0
    %1199 = vmatprep.subr.bf16.mxu0 0
    %1200 = vmatpush1.bf16.msra.mxu0 0
    %1201 = vmatprep.subr.bf16.mxu0 0
    %1202 = vmatpush1.bf16.msra.mxu0 0
    %1203 = vmatprep.subr.bf16.mxu0 0
    %1204 = vmatpush1.bf16.msra.mxu0 0
    %1205 = vmatprep.subr.bf16.mxu0 0
    %1206 = vmatpush1.bf16.msra.mxu0 0
    %1207 = vmatprep.subr.bf16.mxu0 0
    %1208 = vmatpush1.bf16.msra.mxu0 0
    %1209 = vmatprep.subr.bf16.mxu0 0
    %1210 = vmatpush1.bf16.msra.mxu0 0
    %1211 = vmatprep.subr.bf16.mxu0 0
    %1212 = vmatpush1.bf16.msra.mxu0 0
    %1213 = vmatprep.subr.bf16.mxu0 0
    %1214 = vmatpush1.bf16.msra.mxu0 0
    %1215 = vmatprep.subr.bf16.mxu0 0
    %1216 = vmatpush1.bf16.msra.mxu0 0
    %1217 = vmatprep.subr.bf16.mxu0 0
    %1218 = vmatpush1.bf16.msra.mxu0 0
    %1219 = vmatprep.mubr.bf16.mxu0 0
    %1220 = vmatmul.mubr.bf16.gmra.mrb[0].mxu0 %v1185
    %v1221 = vpop.f32.mrb[0].mxu0
    %v1222 = vadd.f32 %v1158, %v1221
    %v1223 = vpop.f32.mrb[0].mxu0
    %v1224 = vpop.f32.mrb[0].mxu0
    %v1225 = vadd.f32 %v1158, %v1224
    %v1226 = vpop.f32.mrb[0].mxu0
    %1227 = vdwg.mxu0
    %1228 = vst [vmem:[#allocation4] sm:$0xff] %v1222
    %1229 = vst [vmem:[#allocation4 + $0x8] sm:$0xff] %v1225
    %v1230 = vpack.c.bf16 %v880, %v877
    %v1231 = vld [vmem:[%s14] sm:$0xf]
    %v1232 = vld [vmem:[%s14 + $0x4] sm:$0xf]
    %v1233 = vld [vmem:[%s14 + $0x8] sm:$0xf]
    %v1234 = vld [vmem:[%s14 + $0xc] sm:$0xf]
    %v1239 = vunpack.c.l.b16 %v1231
    %v1240 = vunpack.c.l.b16 %v1232
    %v1241 = vunpack.c.l.b16 %v1233
    %v1242 = vunpack.c.l.b16 %v1234
    %v1243 = vpack.c.b16 %v1240, %v1239
    %v1244 = vpack.c.b16 %v1242, %v1241
    %v1248 = vsel %vm181, %v1230, 0
    %1250 = vmatprep.subr.bf16.mxu0 0
    %1251 = vmatpush1.bf16.msra.mxu0 %v1243
    %1252 = vmatprep.subr.bf16.mxu0 0
    %1253 = vmatpush1.bf16.msra.mxu0 %v1244
    %1254 = vmatprep.subr.bf16.mxu0 0
    %1255 = vmatpush1.bf16.msra.mxu0 0
    %1256 = vmatprep.subr.bf16.mxu0 0
    %1257 = vmatpush1.bf16.msra.mxu0 0
    %1258 = vmatprep.subr.bf16.mxu0 0
    %1259 = vmatpush1.bf16.msra.mxu0 0
    %1260 = vmatprep.subr.bf16.mxu0 0
    %1261 = vmatpush1.bf16.msra.mxu0 0
    %1262 = vmatprep.subr.bf16.mxu0 0
    %1263 = vmatpush1.bf16.msra.mxu0 0
    %1264 = vmatprep.subr.bf16.mxu0 0
    %1265 = vmatpush1.bf16.msra.mxu0 0
    %1266 = vmatprep.subr.bf16.mxu0 0
    %1267 = vmatpush1.bf16.msra.mxu0 0
    %1268 = vmatprep.subr.bf16.mxu0 0
    %1269 = vmatpush1.bf16.msra.mxu0 0
    %1270 = vmatprep.subr.bf16.mxu0 0
    %1271 = vmatpush1.bf16.msra.mxu0 0
    %1272 = vmatprep.subr.bf16.mxu0 0
    %1273 = vmatpush1.bf16.msra.mxu0 0
    %1274 = vmatprep.subr.bf16.mxu0 0
    %1275 = vmatpush1.bf16.msra.mxu0 0
    %1276 = vmatprep.subr.bf16.mxu0 0
    %1277 = vmatpush1.bf16.msra.mxu0 0
    %1278 = vmatprep.subr.bf16.mxu0 0
    %1279 = vmatpush1.bf16.msra.mxu0 0
    %1280 = vmatprep.subr.bf16.mxu0 0
    %1281 = vmatpush1.bf16.msra.mxu0 0
    %1282 = vmatprep.mubr.bf16.mxu0 0
    %1283 = vmatmul.mubr.bf16.gmra.mrb[0].mxu0 %v1248
    %v1284 = vpop.f32.mrb[0].mxu0
    %v1285 = vadd.f32 0.0, %v1284
    %v1286 = vpop.f32.mrb[0].mxu0
    %v1287 = vpop.f32.mrb[0].mxu0
    %v1288 = vadd.f32 0.0, %v1287
    %v1289 = vpop.f32.mrb[0].mxu0
    %1290 = vdwg.mxu0
    %1291 = vst [vmem:[#allocation2] sm:$0xff] %v1285
    %1292 = vst [vmem:[#allocation2 + $0x8] sm:$0xff] %v1288
    // Predicated region
    $region62: #{multi_rgcn_forward.1} parent=1 // pred_check
      _
    $region63: #{multi_rgcn_forward.1} parent=1 // pred_check_branch
      %1294 = sbr.rel (0) target = $region65
    $region64: #{multi_rgcn_forward.1} parent=1 // pred_region
      %s1296 = ssub.s32 256, 256
      %1297 = vsyncadd [#allocation3], %s1296
      %s1298 = sshll.u32 [#allocation2], 4
      %s1299 = int_to_ptr.vmem [resolvable:$true] %s1298
      %1304 = dma.vmem_to_hbm [thread:$0]  %s1299, 256, %s15, [#allocation3], 128, 128, 8
    $region65: #{multi_rgcn_forward.1} parent=1 // pred_fallthru
      _
    // Predicated region
    $region66: #{multi_rgcn_forward.1} parent=1 // pred_check
      _
    $region67: #{multi_rgcn_forward.1} parent=1 // pred_check_branch
      %1306 = sbr.rel (0) target = $region69
    $region68: #{multi_rgcn_forward.1} parent=1 // pred_region
      %s1308 = ssub.s32 256, 256
      %1309 = vsyncadd [#allocation5], %s1308
      %s1310 = sshll.u32 [#allocation4], 4
      %s1311 = int_to_ptr.vmem [resolvable:$true] %s1310
      %1316 = dma.vmem_to_hbm [thread:$0]  %s1311, 256, %s16, [#allocation5], 128, 128, 8
    $region69: #{multi_rgcn_forward.1} parent=1 // pred_fallthru
      _
    // Predicated region
    $region70: #{multi_rgcn_forward.1} parent=1 // pred_check
      _
    $region71: #{multi_rgcn_forward.1} parent=1 // pred_check_branch
      %1318 = sbr.rel (0) target = $region73
    $region72: #{multi_rgcn_forward.1} parent=1 // pred_region
      %1319 = dma.done [#allocation3], 256
    $region73: #{multi_rgcn_forward.1} parent=1 // pred_fallthru
      _
    // Predicated region
    $region74: #{multi_rgcn_forward.1} parent=1 // pred_check
      _
    $region75: #{multi_rgcn_forward.1} parent=1 // pred_check_branch
      %1321 = sbr.rel (0) target = $region77
    $region76: #{multi_rgcn_forward.1} parent=1 // pred_region
      %1322 = dma.done [#allocation5], 256
    $region77: #{multi_rgcn_forward.1} parent=1 // pred_fallthru
      _
    %1323 = vsyncpa [#allocation3], 1
    %1324 = vsyncpa [#allocation5], 1

</llo_original>
